<compile_context>
chip_gen: v5e
topology: v5e:2x2
jax: 0.10.0
libtpu: 0.0.40
codegen_flags: <defaults>
</compile_context>

<pallas_src>
import functools

import jax
import jax.numpy as jnp
from jax import lax
from jax.experimental import pallas as pl
from jax.experimental.pallas import tpu as pltpu

MID = 128  # mid_channel in the PyTorch module


def tdnn_kernel(t_ref, x_ref,
                w1_ref, b1_ref, w2_ref, b2_ref, w3_ref, b3_ref,
                w4_ref, b4_ref, w5_ref, b5_ref,
                o_ref, *, seq_len):
    # t_ref : (N, 1) int32  -- time index of each row within its batch element
    # x_ref : (N, Cin) f32  -- N = batch_block * seq_len rows (time-major)
    # w1    : (5, Cin, 128) bf16
    # w2,w3 : (3*128, 128) bf16   (taps stacked on the contraction axis)
    # w4    : (128, 128) bf16 ;  w5 : (128, Cout_pad) bf16
    # biases: (1, C) f32.  Output block: (N, Cout_pad), lane-dense.
    n_rows = x_ref.shape[0]
    row_t = t_ref[...]                      # (N, 1) int32

    def shifted(v, off):
        # v[i] -> v[i + off] within each batch element; zero outside [0, T).
        # Roll rides the XLU slot; the float mask kills both the boundary rows
        # and any cross-batch leakage from the flattened-row layout.
        if off == 0:
            return v
        rolled = pltpu.roll(v, shift=(-off) % n_rows, axis=0)
        keep = ((row_t + off >= 0) & (row_t + off < seq_len)).astype(v.dtype)
        return rolled * keep                # (N, C) * (N, 1) lane-broadcast

    # ---- conv1: k=5, d=1, p=2, + ReLU (per-tap matmuls; Cin is small) ----
    x = x_ref[...]
    acc = jnp.zeros((n_rows, MID), jnp.float32)
    for r in range(5):
        xs = shifted(x, r - 2).astype(jnp.bfloat16)
        acc = acc + jnp.dot(xs, w1_ref[r], preferred_element_type=jnp.float32)
    h = jnp.maximum(acc + b1_ref[...], 0.0)

    # ---- conv2: k=3, d=2, p=2, + ReLU (taps fused along contraction) ----
    im = jnp.concatenate([shifted(h, o) for o in (-2, 0, 2)], axis=1)
    acc = jnp.dot(im.astype(jnp.bfloat16), w2_ref[...],
                  preferred_element_type=jnp.float32)
    h = jnp.maximum(acc + b2_ref[...], 0.0)

    # ---- conv3: k=3, d=3, p=3, + ReLU (taps fused along contraction) ----
    im = jnp.concatenate([shifted(h, o) for o in (-3, 0, 3)], axis=1)
    acc = jnp.dot(im.astype(jnp.bfloat16), w3_ref[...],
                  preferred_element_type=jnp.float32)
    h = jnp.maximum(acc + b3_ref[...], 0.0)

    # ---- conv4: k=1, + ReLU ----
    acc = jnp.dot(h.astype(jnp.bfloat16), w4_ref[...],
                  preferred_element_type=jnp.float32)
    h = jnp.maximum(acc + b4_ref[...], 0.0)

    # ---- conv5: k=1, no ReLU (Cout zero-padded to a lane-dense width) ----
    out = jnp.dot(h.astype(jnp.bfloat16), w5_ref[...],
                  preferred_element_type=jnp.float32) + b5_ref[...]
    o_ref[...] = out.astype(o_ref.dtype)


def _pick_batch_block(B, T, max_rows=1024):
    """Largest divisor of B whose row-tile (bb*T) stays modest."""
    bb = B
    for d in range(B, 0, -1):
        if B % d == 0 and d * T <= max_rows:
            bb = d
            break
    if bb != B and (bb * T) % 8 != 0:
        bb = B  # keep full-array block so the (8,128) tiling rule is met
    return bb


def tdnn_forward(x, params):
    """x: (B, C_in, T) float32 (PyTorch NCT layout).  Returns (B, C_out, T)."""
    w1, b1, w2, b2, w3, b3, w4, b4, w5, b5 = params
    B, Cin, T = x.shape
    Cout = w5.shape[-1]
    cout_pad = ((Cout + 127) // 128) * 128

    bb = _pick_batch_block(B, T)
    n_rows = bb * T
    grid = (B // bb,)

    # NCT -> flattened time-major rows (B*T, Cin).
    # TODO(synk): callers that already hold activations in (B, T, C) layout can
    # skip this transpose (and the one on the way out) entirely.
    x_rows = jnp.transpose(x, (0, 2, 1)).reshape(B * T, Cin)
    local_t = jnp.tile(jnp.arange(T, dtype=jnp.int32), bb).reshape(n_rows, 1)

    # bf16 weights; conv2/conv3 taps stacked on the contraction axis;
    # conv5 zero-padded to a lane-dense output width.
    w1b = w1.astype(jnp.bfloat16)
    w2s = w2.reshape(3 * MID, MID).astype(jnp.bfloat16)
    w3s = w3.reshape(3 * MID, MID).astype(jnp.bfloat16)
    w4s = w4.reshape(MID, MID).astype(jnp.bfloat16)
    w5p = jnp.zeros((MID, cout_pad), jnp.bfloat16).at[:, :Cout].set(
        w5.reshape(MID, Cout).astype(jnp.bfloat16))
    b5p = jnp.zeros((1, cout_pad), jnp.float32).at[:, :Cout].set(b5)

    flops = 2 * B * T * (5 * Cin * MID + 2 * 3 * MID * MID + MID * MID
                         + MID * cout_pad)
    bytes_accessed = (4 * B * T * (Cin + cout_pad) + 4 * n_rows
                      + 2 * (5 * Cin * MID + 6 * MID * MID + MID * MID
                             + MID * cout_pad)
                      + 4 * (4 * MID + cout_pad))

    out = pl.pallas_call(
        functools.partial(tdnn_kernel, seq_len=T),
        out_shape=jax.ShapeDtypeStruct((B * T, cout_pad), x.dtype),
        grid_spec=pltpu.PrefetchScalarGridSpec(
            num_scalar_prefetch=0,
            grid=grid,
            in_specs=[
                pl.BlockSpec((n_rows, 1), lambda i: (0, 0)),      # local time
                pl.BlockSpec((n_rows, Cin), lambda i: (i, 0)),    # activations
                pl.BlockSpec(w1b.shape, lambda i: (0, 0, 0)),
                pl.BlockSpec(b1.shape, lambda i: (0, 0)),
                pl.BlockSpec(w2s.shape, lambda i: (0, 0)),
                pl.BlockSpec(b2.shape, lambda i: (0, 0)),
                pl.BlockSpec(w3s.shape, lambda i: (0, 0)),
                pl.BlockSpec(b3.shape, lambda i: (0, 0)),
                pl.BlockSpec(w4s.shape, lambda i: (0, 0)),
                pl.BlockSpec(b4.shape, lambda i: (0, 0)),
                pl.BlockSpec(w5p.shape, lambda i: (0, 0)),
                pl.BlockSpec(b5p.shape, lambda i: (0, 0)),
            ],
            out_specs=pl.BlockSpec((n_rows, cout_pad), lambda i: (i, 0)),
        ),
        compiler_params=pltpu.CompilerParams(
            dimension_semantics=("parallel",),
            vmem_limit_bytes=32 * 1024 * 1024),
        cost_estimate=pl.CostEstimate(
            flops=flops, transcendentals=0, bytes_accessed=bytes_accessed),
    )(local_t, x_rows, w1b, b1, w2s, b2, w3s, b3, w4s, b4, w5p, b5p)

    out = out.reshape(B, T, cout_pad)[:, :, :Cout]
    return jnp.transpose(out, (0, 2, 1))  # (B, C_out, T)


def init_params(key, in_channels, out_channels):
    """Deterministic init mimicking PyTorch Conv1d default U(-k, k), k=1/sqrt(fan_in)."""
    def conv_init(key, k, cin, cout):
        kw, kb = jax.random.split(key)
        bound = 1.0 / jnp.sqrt(cin * k)
        w = jax.random.uniform(kw, (k, cin, cout), jnp.float32, -bound, bound)
        b = jax.random.uniform(kb, (1, cout), jnp.float32, -bound, bound)
        return w, b

    keys = jax.random.split(key, 5)
    w1, b1 = conv_init(keys[0], 5, in_channels, MID)
    w2, b2 = conv_init(keys[1], 3, MID, MID)
    w3, b3 = conv_init(keys[2], 3, MID, MID)
    w4, b4 = conv_init(keys[3], 1, MID, MID)
    w5, b5 = conv_init(keys[4], 1, MID, out_channels)
    return (w1, b1, w2, b2, w3, b3, w4, b4, w5, b5)


def tdnn_reference(x, params):
    """Pure-JAX f32 reference using lax.conv_general_dilated (PyTorch semantics)."""
    w1, b1, w2, b2, w3, b3, w4, b4, w5, b5 = params

    def conv1d(x, w_kio, b, pad, dil):
        w_oiw = jnp.transpose(w_kio, (2, 1, 0))  # (K, Cin, Cout) -> OIW
        y = lax.conv_general_dilated(
            x, w_oiw, window_strides=(1,), padding=[(pad, pad)],
            rhs_dilation=(dil,), dimension_numbers=("NCW", "OIW", "NCW"))
        return y + b[0][None, :, None]

    h = jax.nn.relu(conv1d(x, w1, b1, 2, 1))
    h = jax.nn.relu(conv1d(h, w2, b2, 2, 2))
    h = jax.nn.relu(conv1d(h, w3, b3, 3, 3))
    h = jax.nn.relu(conv1d(h, w4, b4, 0, 1))
    return conv1d(h, w5, b5, 0, 1)


if __name__ == "__main__":
    B, C_IN, T, C_OUT = 2, 16, 16, 64

    key = jax.random.PRNGKey(0)
    kx, kp = jax.random.split(key)
    x = jax.random.normal(kx, (B, C_IN, T), dtype=jnp.float32)
    params = init_params(kp, C_IN, C_OUT)

    y = jax.block_until_ready(jax.jit(tdnn_forward)(x, params))
    y_ref = jax.block_until_ready(tdnn_reference(x, params))

    assert y.shape == (B, C_OUT, T), y.shape
    # bf16 MXU inputs (f32 accumulation): allow ~5% of the output scale.
    err = float(jnp.max(jnp.abs(y - y_ref)))
    scale = float(jnp.max(jnp.abs(y_ref)))
    assert err <= 5e-2 * scale + 1e-3, (err, scale)

    print("KERNEL_OK")
</pallas_src>

<mosaic_0001>
module attributes {stable_mosaic.version = 11 : i64} {
  func.func @tdnn_kernel(%arg0: i32, %arg1: memref<32x1xi32, #tpu.memory_space<vmem>>, %arg2: memref<32x16xf32, #tpu.memory_space<vmem>>, %arg3: memref<5x16x128xbf16, #tpu.memory_space<vmem>>, %arg4: memref<1x128xf32, #tpu.memory_space<vmem>>, %arg5: memref<384x128xbf16, #tpu.memory_space<vmem>>, %arg6: memref<1x128xf32, #tpu.memory_space<vmem>>, %arg7: memref<384x128xbf16, #tpu.memory_space<vmem>>, %arg8: memref<1x128xf32, #tpu.memory_space<vmem>>, %arg9: memref<128x128xbf16, #tpu.memory_space<vmem>>, %arg10: memref<1x128xf32, #tpu.memory_space<vmem>>, %arg11: memref<128x128xbf16, #tpu.memory_space<vmem>>, %arg12: memref<1x128xf32, #tpu.memory_space<vmem>>, %arg13: memref<32x128xf32, #tpu.memory_space<vmem>>) attributes {dimension_semantics = [#tpu.dimension_semantics<parallel>], iteration_bounds = array<i64: 1>, scalar_prefetch = 0 : i64, scratch_operands = 0 : i64, tpu.core_type = #tpu.core_type<tc>, window_params = [{pipeline_mode = #tpu.pipeline_mode<synchronous>, transform_indices = @transform_0, window_bounds = array<i64: 32, 1>}, {transform_indices = @transform_1, window_bounds = array<i64: 32, 16>}, {pipeline_mode = #tpu.pipeline_mode<synchronous>, transform_indices = @transform_2, window_bounds = array<i64: 5, 16, 128>}, {pipeline_mode = #tpu.pipeline_mode<synchronous>, transform_indices = @transform_3, window_bounds = array<i64: 1, 128>}, {pipeline_mode = #tpu.pipeline_mode<synchronous>, transform_indices = @transform_4, window_bounds = array<i64: 384, 128>}, {pipeline_mode = #tpu.pipeline_mode<synchronous>, transform_indices = @transform_5, window_bounds = array<i64: 1, 128>}, {pipeline_mode = #tpu.pipeline_mode<synchronous>, transform_indices = @transform_6, window_bounds = array<i64: 384, 128>}, {pipeline_mode = #tpu.pipeline_mode<synchronous>, transform_indices = @transform_7, window_bounds = array<i64: 1, 128>}, {pipeline_mode = #tpu.pipeline_mode<synchronous>, transform_indices = @transform_8, window_bounds = array<i64: 128, 128>}, {pipeline_mode = #tpu.pipeline_mode<synchronous>, transform_indices = @transform_9, window_bounds = array<i64: 1, 128>}, {pipeline_mode = #tpu.pipeline_mode<synchronous>, transform_indices = @transform_10, window_bounds = array<i64: 128, 128>}, {pipeline_mode = #tpu.pipeline_mode<synchronous>, transform_indices = @transform_11, window_bounds = array<i64: 1, 128>}, {transform_indices = @transform_12, window_bounds = array<i64: 32, 128>}]} {
    %c0 = arith.constant 0 : index
    %c0_0 = arith.constant 0 : index
    %0 = vector.load %arg1[%c0, %c0_0] : memref<32x1xi32, #tpu.memory_space<vmem>>, vector<32x1xi32>
    %c0_1 = arith.constant 0 : index
    %c0_2 = arith.constant 0 : index
    %1 = vector.load %arg2[%c0_1, %c0_2] : memref<32x16xf32, #tpu.memory_space<vmem>>, vector<32x16xf32>
    %cst = arith.constant 0.000000e+00 : f32
    %2 = vector.broadcast %cst : f32 to vector<32x128xf32>
    %c2_i32 = arith.constant 2 : i32
    %3 = tpu.dynamic_rotate %1 by %c2_i32 dim 0 : vector<32x16xf32>, i32 -> vector<32x16xf32>
    %c-2_i32 = arith.constant -2 : i32
    %4 = vector.broadcast %c-2_i32 : i32 to vector<32x1xi32>
    %5 = arith.addi %0, %4 : vector<32x1xi32>
    %c0_i32 = arith.constant 0 : i32
    %6 = vector.broadcast %c0_i32 : i32 to vector<32x1xi32>
    %7 = arith.cmpi sge, %5, %6 : vector<32x1xi32>
    %c-2_i32_3 = arith.constant -2 : i32
    %8 = vector.broadcast %c-2_i32_3 : i32 to vector<32x1xi32>
    %9 = arith.addi %0, %8 : vector<32x1xi32>
    %c16_i32 = arith.constant 16 : i32
    %10 = vector.broadcast %c16_i32 : i32 to vector<32x1xi32>
    %11 = arith.cmpi slt, %9, %10 : vector<32x1xi32>
    %12 = arith.andi %7, %11 : vector<32x1xi1>
    %13 = arith.extui %12 : vector<32x1xi1> to vector<32x1xi32>
    %14 = arith.sitofp %13 : vector<32x1xi32> to vector<32x1xf32>
    %15 = vector.broadcast %14 : vector<32x1xf32> to vector<32x16xf32>
    %16 = arith.mulf %3, %15 : vector<32x16xf32>
    %17 = arith.truncf %16 : vector<32x16xf32> to vector<32x16xbf16>
    %c0_4 = arith.constant 0 : index
    %c0_5 = arith.constant 0 : index
    %c0_6 = arith.constant 0 : index
    %18 = vector.load %arg3[%c0_4, %c0_5, %c0_6] : memref<5x16x128xbf16, #tpu.memory_space<vmem>>, vector<1x16x128xbf16>
    %19 = vector.shape_cast %18 : vector<1x16x128xbf16> to vector<16x128xbf16>
    %cst_7 = arith.constant dense<0.000000e+00> : vector<32x128xf32>
    %20 = tpu.matmul %17, %19, %cst_7 {dimension_numbers = #tpu.dot_dimension_numbers<[1], [0], [0], [1], [0, 0, 1, 1], [], []>} : vector<32x16xbf16>, vector<16x128xbf16>, vector<32x128xf32> -> vector<32x128xf32>
    %21 = arith.addf %2, %20 : vector<32x128xf32>
    %c1_i32 = arith.constant 1 : i32
    %22 = tpu.dynamic_rotate %1 by %c1_i32 dim 0 : vector<32x16xf32>, i32 -> vector<32x16xf32>
    %c-1_i32 = arith.constant -1 : i32
    %23 = vector.broadcast %c-1_i32 : i32 to vector<32x1xi32>
    %24 = arith.addi %0, %23 : vector<32x1xi32>
    %c0_i32_8 = arith.constant 0 : i32
    %25 = vector.broadcast %c0_i32_8 : i32 to vector<32x1xi32>
    %26 = arith.cmpi sge, %24, %25 : vector<32x1xi32>
    %c-1_i32_9 = arith.constant -1 : i32
    %27 = vector.broadcast %c-1_i32_9 : i32 to vector<32x1xi32>
    %28 = arith.addi %0, %27 : vector<32x1xi32>
    %c16_i32_10 = arith.constant 16 : i32
    %29 = vector.broadcast %c16_i32_10 : i32 to vector<32x1xi32>
    %30 = arith.cmpi slt, %28, %29 : vector<32x1xi32>
    %31 = arith.andi %26, %30 : vector<32x1xi1>
    %32 = arith.extui %31 : vector<32x1xi1> to vector<32x1xi32>
    %33 = arith.sitofp %32 : vector<32x1xi32> to vector<32x1xf32>
    %34 = vector.broadcast %33 : vector<32x1xf32> to vector<32x16xf32>
    %35 = arith.mulf %22, %34 : vector<32x16xf32>
    %36 = arith.truncf %35 : vector<32x16xf32> to vector<32x16xbf16>
    %c1 = arith.constant 1 : index
    %c0_11 = arith.constant 0 : index
    %c0_12 = arith.constant 0 : index
    %37 = vector.load %arg3[%c1, %c0_11, %c0_12] : memref<5x16x128xbf16, #tpu.memory_space<vmem>>, vector<1x16x128xbf16>
    %38 = vector.shape_cast %37 : vector<1x16x128xbf16> to vector<16x128xbf16>
    %cst_13 = arith.constant dense<0.000000e+00> : vector<32x128xf32>
    %39 = tpu.matmul %36, %38, %cst_13 {dimension_numbers = #tpu.dot_dimension_numbers<[1], [0], [0], [1], [0, 0, 1, 1], [], []>} : vector<32x16xbf16>, vector<16x128xbf16>, vector<32x128xf32> -> vector<32x128xf32>
    %40 = arith.addf %21, %39 : vector<32x128xf32>
    %41 = arith.truncf %1 : vector<32x16xf32> to vector<32x16xbf16>
    %c2 = arith.constant 2 : index
    %c0_14 = arith.constant 0 : index
    %c0_15 = arith.constant 0 : index
    %42 = vector.load %arg3[%c2, %c0_14, %c0_15] : memref<5x16x128xbf16, #tpu.memory_space<vmem>>, vector<1x16x128xbf16>
    %43 = vector.shape_cast %42 : vector<1x16x128xbf16> to vector<16x128xbf16>
    %cst_16 = arith.constant dense<0.000000e+00> : vector<32x128xf32>
    %44 = tpu.matmul %41, %43, %cst_16 {dimension_numbers = #tpu.dot_dimension_numbers<[1], [0], [0], [1], [0, 0, 1, 1], [], []>} : vector<32x16xbf16>, vector<16x128xbf16>, vector<32x128xf32> -> vector<32x128xf32>
    %45 = arith.addf %40, %44 : vector<32x128xf32>
    %c31_i32 = arith.constant 31 : i32
    %46 = tpu.dynamic_rotate %1 by %c31_i32 dim 0 : vector<32x16xf32>, i32 -> vector<32x16xf32>
    %c1_i32_17 = arith.constant 1 : i32
    %47 = vector.broadcast %c1_i32_17 : i32 to vector<32x1xi32>
    %48 = arith.addi %0, %47 : vector<32x1xi32>
    %c0_i32_18 = arith.constant 0 : i32
    %49 = vector.broadcast %c0_i32_18 : i32 to vector<32x1xi32>
    %50 = arith.cmpi sge, %48, %49 : vector<32x1xi32>
    %c1_i32_19 = arith.constant 1 : i32
    %51 = vector.broadcast %c1_i32_19 : i32 to vector<32x1xi32>
    %52 = arith.addi %0, %51 : vector<32x1xi32>
    %c16_i32_20 = arith.constant 16 : i32
    %53 = vector.broadcast %c16_i32_20 : i32 to vector<32x1xi32>
    %54 = arith.cmpi slt, %52, %53 : vector<32x1xi32>
    %55 = arith.andi %50, %54 : vector<32x1xi1>
    %56 = arith.extui %55 : vector<32x1xi1> to vector<32x1xi32>
    %57 = arith.sitofp %56 : vector<32x1xi32> to vector<32x1xf32>
    %58 = vector.broadcast %57 : vector<32x1xf32> to vector<32x16xf32>
    %59 = arith.mulf %46, %58 : vector<32x16xf32>
    %60 = arith.truncf %59 : vector<32x16xf32> to vector<32x16xbf16>
    %c3 = arith.constant 3 : index
    %c0_21 = arith.constant 0 : index
    %c0_22 = arith.constant 0 : index
    %61 = vector.load %arg3[%c3, %c0_21, %c0_22] : memref<5x16x128xbf16, #tpu.memory_space<vmem>>, vector<1x16x128xbf16>
    %62 = vector.shape_cast %61 : vector<1x16x128xbf16> to vector<16x128xbf16>
    %cst_23 = arith.constant dense<0.000000e+00> : vector<32x128xf32>
    %63 = tpu.matmul %60, %62, %cst_23 {dimension_numbers = #tpu.dot_dimension_numbers<[1], [0], [0], [1], [0, 0, 1, 1], [], []>} : vector<32x16xbf16>, vector<16x128xbf16>, vector<32x128xf32> -> vector<32x128xf32>
    %64 = arith.addf %45, %63 : vector<32x128xf32>
    %c30_i32 = arith.constant 30 : i32
    %65 = tpu.dynamic_rotate %1 by %c30_i32 dim 0 : vector<32x16xf32>, i32 -> vector<32x16xf32>
    %c2_i32_24 = arith.constant 2 : i32
    %66 = vector.broadcast %c2_i32_24 : i32 to vector<32x1xi32>
    %67 = arith.addi %0, %66 : vector<32x1xi32>
    %c0_i32_25 = arith.constant 0 : i32
    %68 = vector.broadcast %c0_i32_25 : i32 to vector<32x1xi32>
    %69 = arith.cmpi sge, %67, %68 : vector<32x1xi32>
    %c2_i32_26 = arith.constant 2 : i32
    %70 = vector.broadcast %c2_i32_26 : i32 to vector<32x1xi32>
    %71 = arith.addi %0, %70 : vector<32x1xi32>
    %c16_i32_27 = arith.constant 16 : i32
    %72 = vector.broadcast %c16_i32_27 : i32 to vector<32x1xi32>
    %73 = arith.cmpi slt, %71, %72 : vector<32x1xi32>
    %74 = arith.andi %69, %73 : vector<32x1xi1>
    %75 = arith.extui %74 : vector<32x1xi1> to vector<32x1xi32>
    %76 = arith.sitofp %75 : vector<32x1xi32> to vector<32x1xf32>
    %77 = vector.broadcast %76 : vector<32x1xf32> to vector<32x16xf32>
    %78 = arith.mulf %65, %77 : vector<32x16xf32>
    %79 = arith.truncf %78 : vector<32x16xf32> to vector<32x16xbf16>
    %c4 = arith.constant 4 : index
    %c0_28 = arith.constant 0 : index
    %c0_29 = arith.constant 0 : index
    %80 = vector.load %arg3[%c4, %c0_28, %c0_29] : memref<5x16x128xbf16, #tpu.memory_space<vmem>>, vector<1x16x128xbf16>
    %81 = vector.shape_cast %80 : vector<1x16x128xbf16> to vector<16x128xbf16>
    %cst_30 = arith.constant dense<0.000000e+00> : vector<32x128xf32>
    %82 = tpu.matmul %79, %81, %cst_30 {dimension_numbers = #tpu.dot_dimension_numbers<[1], [0], [0], [1], [0, 0, 1, 1], [], []>} : vector<32x16xbf16>, vector<16x128xbf16>, vector<32x128xf32> -> vector<32x128xf32>
    %83 = arith.addf %64, %82 : vector<32x128xf32>
    %c0_31 = arith.constant 0 : index
    %c0_32 = arith.constant 0 : index
    %84 = vector.load %arg4[%c0_31, %c0_32] : memref<1x128xf32, #tpu.memory_space<vmem>>, vector<1x128xf32>
    %85 = vector.broadcast %84 : vector<1x128xf32> to vector<32x128xf32>
    %86 = arith.addf %83, %85 : vector<32x128xf32>
    %cst_33 = arith.constant 0.000000e+00 : f32
    %87 = vector.broadcast %cst_33 : f32 to vector<32x128xf32>
    %88 = arith.maximumf %86, %87 : vector<32x128xf32>
    %c2_i32_34 = arith.constant 2 : i32
    %89 = tpu.dynamic_rotate %88 by %c2_i32_34 dim 0 : vector<32x128xf32>, i32 -> vector<32x128xf32>
    %c-2_i32_35 = arith.constant -2 : i32
    %90 = vector.broadcast %c-2_i32_35 : i32 to vector<32x1xi32>
    %91 = arith.addi %0, %90 : vector<32x1xi32>
    %c0_i32_36 = arith.constant 0 : i32
    %92 = vector.broadcast %c0_i32_36 : i32 to vector<32x1xi32>
    %93 = arith.cmpi sge, %91, %92 : vector<32x1xi32>
    %c-2_i32_37 = arith.constant -2 : i32
    %94 = vector.broadcast %c-2_i32_37 : i32 to vector<32x1xi32>
    %95 = arith.addi %0, %94 : vector<32x1xi32>
    %c16_i32_38 = arith.constant 16 : i32
    %96 = vector.broadcast %c16_i32_38 : i32 to vector<32x1xi32>
    %97 = arith.cmpi slt, %95, %96 : vector<32x1xi32>
    %98 = arith.andi %93, %97 : vector<32x1xi1>
    %99 = arith.extui %98 : vector<32x1xi1> to vector<32x1xi32>
    %100 = arith.sitofp %99 : vector<32x1xi32> to vector<32x1xf32>
    %101 = vector.broadcast %100 : vector<32x1xf32> to vector<32x128xf32>
    %102 = arith.mulf %89, %101 : vector<32x128xf32>
    %c30_i32_39 = arith.constant 30 : i32
    %103 = tpu.dynamic_rotate %88 by %c30_i32_39 dim 0 : vector<32x128xf32>, i32 -> vector<32x128xf32>
    %c2_i32_40 = arith.constant 2 : i32
    %104 = vector.broadcast %c2_i32_40 : i32 to vector<32x1xi32>
    %105 = arith.addi %0, %104 : vector<32x1xi32>
    %c0_i32_41 = arith.constant 0 : i32
    %106 = vector.broadcast %c0_i32_41 : i32 to vector<32x1xi32>
    %107 = arith.cmpi sge, %105, %106 : vector<32x1xi32>
    %c2_i32_42 = arith.constant 2 : i32
    %108 = vector.broadcast %c2_i32_42 : i32 to vector<32x1xi32>
    %109 = arith.addi %0, %108 : vector<32x1xi32>
    %c16_i32_43 = arith.constant 16 : i32
    %110 = vector.broadcast %c16_i32_43 : i32 to vector<32x1xi32>
    %111 = arith.cmpi slt, %109, %110 : vector<32x1xi32>
    %112 = arith.andi %107, %111 : vector<32x1xi1>
    %113 = arith.extui %112 : vector<32x1xi1> to vector<32x1xi32>
    %114 = arith.sitofp %113 : vector<32x1xi32> to vector<32x1xf32>
    %115 = vector.broadcast %114 : vector<32x1xf32> to vector<32x128xf32>
    %116 = arith.mulf %103, %115 : vector<32x128xf32>
    %117 = tpu.concatenate %102, %88, %116 in 1 : vector<32x128xf32>, vector<32x128xf32>, vector<32x128xf32> -> vector<32x384xf32>
    %118 = arith.truncf %117 : vector<32x384xf32> to vector<32x384xbf16>
    %c0_44 = arith.constant 0 : index
    %c0_45 = arith.constant 0 : index
    %119 = vector.load %arg5[%c0_44, %c0_45] : memref<384x128xbf16, #tpu.memory_space<vmem>>, vector<384x128xbf16>
    %cst_46 = arith.constant dense<0.000000e+00> : vector<32x128xf32>
    %120 = tpu.matmul %118, %119, %cst_46 {dimension_numbers = #tpu.dot_dimension_numbers<[1], [0], [0], [1], [0, 0, 1, 1], [], []>} : vector<32x384xbf16>, vector<384x128xbf16>, vector<32x128xf32> -> vector<32x128xf32>
    %c0_47 = arith.constant 0 : index
    %c0_48 = arith.constant 0 : index
    %121 = vector.load %arg6[%c0_47, %c0_48] : memref<1x128xf32, #tpu.memory_space<vmem>>, vector<1x128xf32>
    %122 = vector.broadcast %121 : vector<1x128xf32> to vector<32x128xf32>
    %123 = arith.addf %120, %122 : vector<32x128xf32>
    %cst_49 = arith.constant 0.000000e+00 : f32
    %124 = vector.broadcast %cst_49 : f32 to vector<32x128xf32>
    %125 = arith.maximumf %123, %124 : vector<32x128xf32>
    %c3_i32 = arith.constant 3 : i32
    %126 = tpu.dynamic_rotate %125 by %c3_i32 dim 0 : vector<32x128xf32>, i32 -> vector<32x128xf32>
    %c-3_i32 = arith.constant -3 : i32
    %127 = vector.broadcast %c-3_i32 : i32 to vector<32x1xi32>
    %128 = arith.addi %0, %127 : vector<32x1xi32>
    %c0_i32_50 = arith.constant 0 : i32
    %129 = vector.broadcast %c0_i32_50 : i32 to vector<32x1xi32>
    %130 = arith.cmpi sge, %128, %129 : vector<32x1xi32>
    %c-3_i32_51 = arith.constant -3 : i32
    %131 = vector.broadcast %c-3_i32_51 : i32 to vector<32x1xi32>
    %132 = arith.addi %0, %131 : vector<32x1xi32>
    %c16_i32_52 = arith.constant 16 : i32
    %133 = vector.broadcast %c16_i32_52 : i32 to vector<32x1xi32>
    %134 = arith.cmpi slt, %132, %133 : vector<32x1xi32>
    %135 = arith.andi %130, %134 : vector<32x1xi1>
    %136 = arith.extui %135 : vector<32x1xi1> to vector<32x1xi32>
    %137 = arith.sitofp %136 : vector<32x1xi32> to vector<32x1xf32>
    %138 = vector.broadcast %137 : vector<32x1xf32> to vector<32x128xf32>
    %139 = arith.mulf %126, %138 : vector<32x128xf32>
    %c29_i32 = arith.constant 29 : i32
    %140 = tpu.dynamic_rotate %125 by %c29_i32 dim 0 : vector<32x128xf32>, i32 -> vector<32x128xf32>
    %c3_i32_53 = arith.constant 3 : i32
    %141 = vector.broadcast %c3_i32_53 : i32 to vector<32x1xi32>
    %142 = arith.addi %0, %141 : vector<32x1xi32>
    %c0_i32_54 = arith.constant 0 : i32
    %143 = vector.broadcast %c0_i32_54 : i32 to vector<32x1xi32>
    %144 = arith.cmpi sge, %142, %143 : vector<32x1xi32>
    %c3_i32_55 = arith.constant 3 : i32
    %145 = vector.broadcast %c3_i32_55 : i32 to vector<32x1xi32>
    %146 = arith.addi %0, %145 : vector<32x1xi32>
    %c16_i32_56 = arith.constant 16 : i32
    %147 = vector.broadcast %c16_i32_56 : i32 to vector<32x1xi32>
    %148 = arith.cmpi slt, %146, %147 : vector<32x1xi32>
    %149 = arith.andi %144, %148 : vector<32x1xi1>
    %150 = arith.extui %149 : vector<32x1xi1> to vector<32x1xi32>
    %151 = arith.sitofp %150 : vector<32x1xi32> to vector<32x1xf32>
    %152 = vector.broadcast %151 : vector<32x1xf32> to vector<32x128xf32>
    %153 = arith.mulf %140, %152 : vector<32x128xf32>
    %154 = tpu.concatenate %139, %125, %153 in 1 : vector<32x128xf32>, vector<32x128xf32>, vector<32x128xf32> -> vector<32x384xf32>
    %155 = arith.truncf %154 : vector<32x384xf32> to vector<32x384xbf16>
    %c0_57 = arith.constant 0 : index
    %c0_58 = arith.constant 0 : index
    %156 = vector.load %arg7[%c0_57, %c0_58] : memref<384x128xbf16, #tpu.memory_space<vmem>>, vector<384x128xbf16>
    %cst_59 = arith.constant dense<0.000000e+00> : vector<32x128xf32>
    %157 = tpu.matmul %155, %156, %cst_59 {dimension_numbers = #tpu.dot_dimension_numbers<[1], [0], [0], [1], [0, 0, 1, 1], [], []>} : vector<32x384xbf16>, vector<384x128xbf16>, vector<32x128xf32> -> vector<32x128xf32>
    %c0_60 = arith.constant 0 : index
    %c0_61 = arith.constant 0 : index
    %158 = vector.load %arg8[%c0_60, %c0_61] : memref<1x128xf32, #tpu.memory_space<vmem>>, vector<1x128xf32>
    %159 = vector.broadcast %158 : vector<1x128xf32> to vector<32x128xf32>
    %160 = arith.addf %157, %159 : vector<32x128xf32>
    %cst_62 = arith.constant 0.000000e+00 : f32
    %161 = vector.broadcast %cst_62 : f32 to vector<32x128xf32>
    %162 = arith.maximumf %160, %161 : vector<32x128xf32>
    %163 = arith.truncf %162 : vector<32x128xf32> to vector<32x128xbf16>
    %c0_63 = arith.constant 0 : index
    %c0_64 = arith.constant 0 : index
    %164 = vector.load %arg9[%c0_63, %c0_64] : memref<128x128xbf16, #tpu.memory_space<vmem>>, vector<128x128xbf16>
    %cst_65 = arith.constant dense<0.000000e+00> : vector<32x128xf32>
    %165 = tpu.matmul %163, %164, %cst_65 {dimension_numbers = #tpu.dot_dimension_numbers<[1], [0], [0], [1], [0, 0, 1, 1], [], []>} : vector<32x128xbf16>, vector<128x128xbf16>, vector<32x128xf32> -> vector<32x128xf32>
    %c0_66 = arith.constant 0 : index
    %c0_67 = arith.constant 0 : index
    %166 = vector.load %arg10[%c0_66, %c0_67] : memref<1x128xf32, #tpu.memory_space<vmem>>, vector<1x128xf32>
    %167 = vector.broadcast %166 : vector<1x128xf32> to vector<32x128xf32>
    %168 = arith.addf %165, %167 : vector<32x128xf32>
    %cst_68 = arith.constant 0.000000e+00 : f32
    %169 = vector.broadcast %cst_68 : f32 to vector<32x128xf32>
    %170 = arith.maximumf %168, %169 : vector<32x128xf32>
    %171 = arith.truncf %170 : vector<32x128xf32> to vector<32x128xbf16>
    %c0_69 = arith.constant 0 : index
    %c0_70 = arith.constant 0 : index
    %172 = vector.load %arg11[%c0_69, %c0_70] : memref<128x128xbf16, #tpu.memory_space<vmem>>, vector<128x128xbf16>
    %cst_71 = arith.constant dense<0.000000e+00> : vector<32x128xf32>
    %173 = tpu.matmul %171, %172, %cst_71 {dimension_numbers = #tpu.dot_dimension_numbers<[1], [0], [0], [1], [0, 0, 1, 1], [], []>} : vector<32x128xbf16>, vector<128x128xbf16>, vector<32x128xf32> -> vector<32x128xf32>
    %c0_72 = arith.constant 0 : index
    %c0_73 = arith.constant 0 : index
    %174 = vector.load %arg12[%c0_72, %c0_73] : memref<1x128xf32, #tpu.memory_space<vmem>>, vector<1x128xf32>
    %175 = vector.broadcast %174 : vector<1x128xf32> to vector<32x128xf32>
    %176 = arith.addf %173, %175 : vector<32x128xf32>
    %c0_74 = arith.constant 0 : index
    %c0_75 = arith.constant 0 : index
    %177 = vector.load %arg13[%c0_74, %c0_75] : memref<32x128xf32, #tpu.memory_space<vmem>>, vector<32x128xf32>
    tpu.vector_store %arg13[%c0_74, %c0_75], %176 {strides = array<i32>} : memref<32x128xf32, #tpu.memory_space<vmem>>, vector<32x128xf32>,
    return
  }
  func.func @transform_0(%arg0: i32) -> (i32, i32) {
    %c0_i32 = arith.constant 0 : i32
    %c0_i32_0 = arith.constant 0 : i32
    %c0_i32_1 = arith.constant 0 : i32
    return %c0_i32, %c0_i32_0 : i32, i32
  }
  func.func @transform_1(%arg0: i32) -> (i32, i32) {
    %c0_i32 = arith.constant 0 : i32
    %c0_i32_0 = arith.constant 0 : i32
    return %arg0, %c0_i32 : i32, i32
  }
  func.func @transform_2(%arg0: i32) -> (i32, i32, i32) {
    %c0_i32 = arith.constant 0 : i32
    %c0_i32_0 = arith.constant 0 : i32
    %c0_i32_1 = arith.constant 0 : i32
    %c0_i32_2 = arith.constant 0 : i32
    return %c0_i32, %c0_i32_0, %c0_i32_1 : i32, i32, i32
  }
  func.func @transform_3(%arg0: i32) -> (i32, i32) {
    %c0_i32 = arith.constant 0 : i32
    %c0_i32_0 = arith.constant 0 : i32
    %c0_i32_1 = arith.constant 0 : i32
    return %c0_i32, %c0_i32_0 : i32, i32
  }
  func.func @transform_4(%arg0: i32) -> (i32, i32) {
    %c0_i32 = arith.constant 0 : i32
    %c0_i32_0 = arith.constant 0 : i32
    %c0_i32_1 = arith.constant 0 : i32
    return %c0_i32, %c0_i32_0 : i32, i32
  }
  func.func @transform_5(%arg0: i32) -> (i32, i32) {
    %c0_i32 = arith.constant 0 : i32
    %c0_i32_0 = arith.constant 0 : i32
    %c0_i32_1 = arith.constant 0 : i32
    return %c0_i32, %c0_i32_0 : i32, i32
  }
  func.func @transform_6(%arg0: i32) -> (i32, i32) {
    %c0_i32 = arith.constant 0 : i32
    %c0_i32_0 = arith.constant 0 : i32
    %c0_i32_1 = arith.constant 0 : i32
    return %c0_i32, %c0_i32_0 : i32, i32
  }
  func.func @transform_7(%arg0: i32) -> (i32, i32) {
    %c0_i32 = arith.constant 0 : i32
    %c0_i32_0 = arith.constant 0 : i32
    %c0_i32_1 = arith.constant 0 : i32
    return %c0_i32, %c0_i32_0 : i32, i32
  }
  func.func @transform_8(%arg0: i32) -> (i32, i32) {
    %c0_i32 = arith.constant 0 : i32
    %c0_i32_0 = arith.constant 0 : i32
    %c0_i32_1 = arith.constant 0 : i32
    return %c0_i32, %c0_i32_0 : i32, i32
  }
  func.func @transform_9(%arg0: i32) -> (i32, i32) {
    %c0_i32 = arith.constant 0 : i32
    %c0_i32_0 = arith.constant 0 : i32
    %c0_i32_1 = arith.constant 0 : i32
    return %c0_i32, %c0_i32_0 : i32, i32
  }
  func.func @transform_10(%arg0: i32) -> (i32, i32) {
    %c0_i32 = arith.constant 0 : i32
    %c0_i32_0 = arith.constant 0 : i32
    %c0_i32_1 = arith.constant 0 : i32
    return %c0_i32, %c0_i32_0 : i32, i32
  }
  func.func @transform_11(%arg0: i32) -> (i32, i32) {
    %c0_i32 = arith.constant 0 : i32
    %c0_i32_0 = arith.constant 0 : i32
    %c0_i32_1 = arith.constant 0 : i32
    return %c0_i32, %c0_i32_0 : i32, i32
  }
  func.func @transform_12(%arg0: i32) -> (i32, i32) {
    %c0_i32 = arith.constant 0 : i32
    %c0_i32_0 = arith.constant 0 : i32
    return %arg0, %c0_i32 : i32, i32
  }
}

</mosaic_0001>

<llo_original>
// kernel: tile.0
$region0: #{tile.0}
  %s0 = inlined_call_operand.vmem [shape: s32[2,16], index: 0, kind: input, shape index: {}]
  %s1 = inlined_call_operand.vmem [shape: s32[32,1], index: 1, kind: output, shape index: {}]
  $region1: #{tile.0} parent=0
    #allocation0 [shape = 'u8[4096]{0}', space=vmem, size = 0x1000, scoped, tag = 'scoped mem for input reshape']
    %s3 = ssub.s32 4, 1
    %v4 = vld [vmem:[%s0] sm:%s3]
    %5 = vst [vmem:[#allocation0] sm:%s3] %v4
    %v6 = vld [vmem:[#allocation0] sm:$0x3]
    %vm7 = vcmask 7168
    %8 = vst.msk [vmem:[%s1] ss:$16 sm:$0x3] %vm7, %v6
    %v9 = vld [vmem:[#allocation0] sm:$0x3]
    %10 = vrot.lane.b32.xlu0 %v9, 127
    %v11 = vpop.permute.xlu0 %10
    %vm12 = vcmask 7168
    %s13 = scalar_lea.vmem %s1, 1
    %14 = vst.msk [vmem:[%s13] ss:$16 sm:$0x3] %vm12, %v11
    %v15 = vld [vmem:[#allocation0] sm:$0x3]
    %16 = vrot.lane.b32.xlu0 %v15, 126
    %v17 = vpop.permute.xlu0 %16
    %vm18 = vcmask 7168
    %s19 = scalar_lea.vmem %s1, 2
    %20 = vst.msk [vmem:[%s19] ss:$16 sm:$0x3] %vm18, %v17
    %v21 = vld [vmem:[#allocation0] sm:$0x3]
    %22 = vrot.lane.b32.xlu0 %v21, 125
    %v23 = vpop.permute.xlu0 %22
    %vm24 = vcmask 7168
    %s25 = scalar_lea.vmem %s1, 3
    %26 = vst.msk [vmem:[%s25] ss:$16 sm:$0x3] %vm24, %v23
    %v27 = vld [vmem:[#allocation0] sm:$0x3]
    %28 = vrot.lane.b32.xlu0 %v27, 124
    %v29 = vpop.permute.xlu0 %28
    %vm30 = vcmask 7168
    %s31 = scalar_lea.vmem %s1, 4
    %32 = vst.msk [vmem:[%s31] ss:$16 sm:$0x3] %vm30, %v29
    %v33 = vld [vmem:[#allocation0] sm:$0x3]
    %34 = vrot.lane.b32.xlu0 %v33, 123
    %v35 = vpop.permute.xlu0 %34
    %vm36 = vcmask 7168
    %s37 = scalar_lea.vmem %s1, 5
    %38 = vst.msk [vmem:[%s37] ss:$16 sm:$0x3] %vm36, %v35
    %v39 = vld [vmem:[#allocation0] sm:$0x3]
    %40 = vrot.lane.b32.xlu0 %v39, 122
    %v41 = vpop.permute.xlu0 %40
    %vm42 = vcmask 7168
    %s43 = scalar_lea.vmem %s1, 6
    %44 = vst.msk [vmem:[%s43] ss:$16 sm:$0x3] %vm42, %v41
    %v45 = vld [vmem:[#allocation0] sm:$0x3]
    %46 = vrot.lane.b32.xlu0 %v45, 121
    %v47 = vpop.permute.xlu0 %46
    %vm48 = vcmask 7168
    %s49 = scalar_lea.vmem %s1, 7
    %50 = vst.msk [vmem:[%s49] ss:$16 sm:$0x3] %vm48, %v47
    %v51 = vld [vmem:[#allocation0] sm:$0x3]
    %52 = vrot.lane.b32.xlu0 %v51, 120
    %v53 = vpop.permute.xlu0 %52
    %vm54 = vcmask 7168
    %s55 = scalar_lea.vmem %s1, 8
    %56 = vst.msk [vmem:[%s55] ss:$16 sm:$0x3] %vm54, %v53
    %v57 = vld [vmem:[#allocation0] sm:$0x3]
    %58 = vrot.lane.b32.xlu0 %v57, 119
    %v59 = vpop.permute.xlu0 %58
    %vm60 = vcmask 7168
    %s61 = scalar_lea.vmem %s1, 9
    %62 = vst.msk [vmem:[%s61] ss:$16 sm:$0x3] %vm60, %v59
    %v63 = vld [vmem:[#allocation0] sm:$0x3]
    %64 = vrot.lane.b32.xlu0 %v63, 118
    %v65 = vpop.permute.xlu0 %64
    %vm66 = vcmask 7168
    %s67 = scalar_lea.vmem %s1, 10
    %68 = vst.msk [vmem:[%s67] ss:$16 sm:$0x3] %vm66, %v65
    %v69 = vld [vmem:[#allocation0] sm:$0x3]
    %70 = vrot.lane.b32.xlu0 %v69, 117
    %v71 = vpop.permute.xlu0 %70
    %vm72 = vcmask 7168
    %s73 = scalar_lea.vmem %s1, 11
    %74 = vst.msk [vmem:[%s73] ss:$16 sm:$0x3] %vm72, %v71
    %v75 = vld [vmem:[#allocation0] sm:$0x3]
    %76 = vrot.lane.b32.xlu0 %v75, 116
    %v77 = vpop.permute.xlu0 %76
    %vm78 = vcmask 7168
    %s79 = scalar_lea.vmem %s1, 12
    %80 = vst.msk [vmem:[%s79] ss:$16 sm:$0x3] %vm78, %v77
    %v81 = vld [vmem:[#allocation0] sm:$0x3]
    %82 = vrot.lane.b32.xlu0 %v81, 115
    %v83 = vpop.permute.xlu0 %82
    %vm84 = vcmask 7168
    %s85 = scalar_lea.vmem %s1, 13
    %86 = vst.msk [vmem:[%s85] ss:$16 sm:$0x3] %vm84, %v83
    %v87 = vld [vmem:[#allocation0] sm:$0x3]
    %88 = vrot.lane.b32.xlu0 %v87, 114
    %v89 = vpop.permute.xlu0 %88
    %vm90 = vcmask 7168
    %s91 = scalar_lea.vmem %s1, 14
    %92 = vst.msk [vmem:[%s91] ss:$16 sm:$0x3] %vm90, %v89
    %v93 = vld [vmem:[#allocation0] sm:$0x3]
    %94 = vrot.lane.b32.xlu0 %v93, 113
    %v95 = vpop.permute.xlu0 %94
    %vm96 = vcmask 7168
    %s97 = scalar_lea.vmem %s1, 15
    %98 = vst.msk [vmem:[%s97] ss:$16 sm:$0x3] %vm96, %v95

// kernel: tdnn_forward.1
$region0: #{tdnn_forward.1}
  #allocation0 [shape = 'u32[]', space=smem, size = 0x4, offset = 0x4, fixed_abs, tag = 'smem constant byte address 0x4 - core index']
  #allocation1 [shape = 'u32[72,128]{1,0:T(1,128)}', space=vmem, size = 0x9000, scoped, tag = 'internal scratch']
  %s0 = inlined_call_operand.vmem [shape: s32[32,1], index: 0, kind: input, shape index: {}]
  %s1 = inlined_call_operand.vmem [shape: f32[32,16], index: 1, kind: input, shape index: {}]
  %s2 = inlined_call_operand.vmem [shape: bf16[5,16,128], index: 2, kind: input, shape index: {}]
  %s3 = inlined_call_operand.vmem [shape: f32[1,128], index: 3, kind: input, shape index: {}]
  %s4 = inlined_call_operand.vmem [shape: bf16[384,128], index: 4, kind: input, shape index: {}]
  %s5 = inlined_call_operand.vmem [shape: f32[1,128], index: 5, kind: input, shape index: {}]
  %s6 = inlined_call_operand.vmem [shape: bf16[384,128], index: 6, kind: input, shape index: {}]
  %s7 = inlined_call_operand.vmem [shape: f32[1,128], index: 7, kind: input, shape index: {}]
  %s8 = inlined_call_operand.vmem [shape: bf16[128,128], index: 8, kind: input, shape index: {}]
  %s9 = inlined_call_operand.vmem [shape: f32[1,128], index: 9, kind: input, shape index: {}]
  %s10 = inlined_call_operand.vmem [shape: bf16[128,128], index: 10, kind: input, shape index: {}]
  %s11 = inlined_call_operand.vmem [shape: f32[1,128], index: 11, kind: input, shape index: {}]
  %s12 = inlined_call_operand.vmem [shape: f32[32,128], index: 12, kind: output, shape index: {}]
  %s13 = sld [smem:[#allocation0]]
  $region58: #{tdnn_forward.1} parent=0
    _
  %s15 = ssub.s32 1, %s13
  %s16 = scalar_select 0, %s15, %s13
  // Predicated region
  $region2: #{tdnn_forward.1} parent=0 // pred_check
    _
  $region3: #{tdnn_forward.1} parent=0 // pred_check_branch
    %18 = sbr.rel (0) target = $region5
  $region4: #{tdnn_forward.1} parent=0 // pred_region
    _
  $region5: #{tdnn_forward.1} parent=0 // pred_fallthru
    _
  // Predicated region
  $region6: #{tdnn_forward.1} parent=0 // pred_check
    _
  $region7: #{tdnn_forward.1} parent=0 // pred_check_branch
    %20 = sbr.rel (0) target = $region9
  $region8: #{tdnn_forward.1} parent=0 // pred_region
    _
  $region9: #{tdnn_forward.1} parent=0 // pred_fallthru
    _
  // Predicated region
  $region10: #{tdnn_forward.1} parent=0 // pred_check
    _
  $region11: #{tdnn_forward.1} parent=0 // pred_check_branch
    %22 = sbr.rel (0) target = $region13
  $region12: #{tdnn_forward.1} parent=0 // pred_region
    _
  $region13: #{tdnn_forward.1} parent=0 // pred_fallthru
    _
  // Predicated region
  $region14: #{tdnn_forward.1} parent=0 // pred_check
    _
  $region15: #{tdnn_forward.1} parent=0 // pred_check_branch
    %24 = sbr.rel (0) target = $region17
  $region16: #{tdnn_forward.1} parent=0 // pred_region
    _
  $region17: #{tdnn_forward.1} parent=0 // pred_fallthru
    _
  // Predicated region
  $region18: #{tdnn_forward.1} parent=0 // pred_check
    _
  $region19: #{tdnn_forward.1} parent=0 // pred_check_branch
    %26 = sbr.rel (0) target = $region21
  $region20: #{tdnn_forward.1} parent=0 // pred_region
    _
  $region21: #{tdnn_forward.1} parent=0 // pred_fallthru
    _
  // Predicated region
  $region22: #{tdnn_forward.1} parent=0 // pred_check
    _
  $region23: #{tdnn_forward.1} parent=0 // pred_check_branch
    %28 = sbr.rel (0) target = $region25
  $region24: #{tdnn_forward.1} parent=0 // pred_region
    _
  $region25: #{tdnn_forward.1} parent=0 // pred_fallthru
    _
  // Predicated region
  $region26: #{tdnn_forward.1} parent=0 // pred_check
    _
  $region27: #{tdnn_forward.1} parent=0 // pred_check_branch
    %30 = sbr.rel (0) target = $region29
  $region28: #{tdnn_forward.1} parent=0 // pred_region
    _
  $region29: #{tdnn_forward.1} parent=0 // pred_fallthru
    _
  // Predicated region
  $region30: #{tdnn_forward.1} parent=0 // pred_check
    _
  $region31: #{tdnn_forward.1} parent=0 // pred_check_branch
    %32 = sbr.rel (0) target = $region33
  $region32: #{tdnn_forward.1} parent=0 // pred_region
    _
  $region33: #{tdnn_forward.1} parent=0 // pred_fallthru
    _
  // Predicated region
  $region34: #{tdnn_forward.1} parent=0 // pred_check
    _
  $region35: #{tdnn_forward.1} parent=0 // pred_check_branch
    %34 = sbr.rel (0) target = $region37
  $region36: #{tdnn_forward.1} parent=0 // pred_region
    _
  $region37: #{tdnn_forward.1} parent=0 // pred_fallthru
    _
  // Predicated region
  $region38: #{tdnn_forward.1} parent=0 // pred_check
    _
  $region39: #{tdnn_forward.1} parent=0 // pred_check_branch
    %36 = sbr.rel (0) target = $region41
  $region40: #{tdnn_forward.1} parent=0 // pred_region
    _
  $region41: #{tdnn_forward.1} parent=0 // pred_fallthru
    _
  // Predicated region
  $region42: #{tdnn_forward.1} parent=0 // pred_check
    _
  $region43: #{tdnn_forward.1} parent=0 // pred_check_branch
    %38 = sbr.rel (0) target = $region45
  $region44: #{tdnn_forward.1} parent=0 // pred_region
    _
  $region45: #{tdnn_forward.1} parent=0 // pred_fallthru
    _
  // Predicated region
  $region46: #{tdnn_forward.1} parent=0 // pred_check
    _
  $region47: #{tdnn_forward.1} parent=0 // pred_check_branch
    %40 = sbr.rel (0) target = $region49
  $region48: #{tdnn_forward.1} parent=0 // pred_region
    _
  $region49: #{tdnn_forward.1} parent=0 // pred_fallthru
    _
  %v42 = vld [vmem:[%s0] sm:$0xff]
  %v43 = vld [vmem:[%s0 + $0x8] sm:$0xff]
  %v44 = vld [vmem:[%s0 + $0x10] sm:$0xff]
  %v45 = vld [vmem:[%s0 + $0x18] sm:$0xff]
  %v46 = vld [vmem:[%s1] sm:$0xff]
  %v47 = vld [vmem:[%s1 + $0x8] sm:$0xff]
  %v48 = vld [vmem:[%s1 + $0x10] sm:$0xff]
  %v49 = vld [vmem:[%s1 + $0x18] sm:$0xff]
  %v50 = vrot.slane %v46, 6
  %v51 = vrot.slane %v47, 6
  %v52 = vrot.slane %v48, 6
  %v53 = vrot.slane %v49, 6
  %v54 = vlaneseq
  %v55 = vshrl.u32 %v54, 7
  %vm56 = vcmp.lt.s32.totalorder %v55, 2
  %v57 = vsel %vm56, %v52, %v53
  %v58 = vsel %vm56, %v51, %v52
  %v59 = vsel %vm56, %v50, %v51
  %v60 = vsel %vm56, %v53, %v50
  %v61 = vadd.s32 %v42, 4294967294
  %v62 = vadd.s32 %v43, 4294967294
  %v63 = vadd.s32 %v44, 4294967294
  %v64 = vadd.s32 %v45, 4294967294
  %vm65 = vcmp.ge.s32.totalorder %v61, 0
  %vm66 = vcmp.ge.s32.totalorder %v62, 0
  %vm67 = vcmp.ge.s32.totalorder %v63, 0
  %vm68 = vcmp.ge.s32.totalorder %v64, 0
  %vm69 = vcmp.lt.s32.totalorder %v61, 16
  %vm70 = vcmp.lt.s32.totalorder %v62, 16
  %vm71 = vcmp.lt.s32.totalorder %v63, 16
  %vm72 = vcmp.lt.s32.totalorder %v64, 16
  %vm73 = vmand %vm65, %vm69
  %vm74 = vmand %vm66, %vm70
  %vm75 = vmand %vm67, %vm71
  %vm76 = vmand %vm68, %vm72
  %v77 = vsel %vm73, 1, 0
  %v78 = vsel %vm74, 1, 0
  %v79 = vsel %vm75, 1, 0
  %v80 = vsel %vm76, 1, 0
  %v81 = vcvt.s32.f32 %v77
  %v82 = vcvt.s32.f32 %v78
  %v83 = vcvt.s32.f32 %v79
  %v84 = vcvt.s32.f32 %v80
  %86 = vset.pattern.permute.xlu0 0
  %87 = vperm.xlu0 %86, %v81
  %v88 = vpop.permute.xlu0 %87
  %91 = vset.pattern.permute.xlu0 0
  %92 = vperm.xlu0 %91, %v82
  %v93 = vpop.permute.xlu0 %92
  %96 = vset.pattern.permute.xlu0 0
  %97 = vperm.xlu0 %96, %v83
  %v98 = vpop.permute.xlu0 %97
  %101 = vset.pattern.permute.xlu0 0
  %102 = vperm.xlu0 %101, %v84
  %v103 = vpop.permute.xlu0 %102
  %v105 = vmul.f32 %v60, %v88
  %v106 = vmul.f32 %v59, %v93
  %v107 = vmul.f32 %v58, %v98
  %v108 = vmul.f32 %v57, %v103
  %v109 = vpack.c.bf16 %v106, %v105
  %v110 = vpack.c.bf16 %v108, %v107
  %v111 = vld [vmem:[%s2] sm:$0xf]
  %v112 = vld [vmem:[%s2 + $0x4] sm:$0xf]
  %v113 = vrot.slane %v46, 7
  %v114 = vrot.slane %v47, 7
  %v115 = vrot.slane %v48, 7
  %v116 = vrot.slane %v49, 7
  %vm117 = vcmp.lt.s32.totalorder %v55, 1
  %v118 = vsel %vm117, %v115, %v116
  %v119 = vsel %vm117, %v114, %v115
  %v120 = vsel %vm117, %v113, %v114
  %v121 = vsel %vm117, %v116, %v113
  %v122 = vadd.s32 %v42, 4294967295
  %v123 = vadd.s32 %v43, 4294967295
  %v124 = vadd.s32 %v44, 4294967295
  %v125 = vadd.s32 %v45, 4294967295
  %vm126 = vcmp.ge.s32.totalorder %v122, 0
  %vm127 = vcmp.ge.s32.totalorder %v123, 0
  %vm128 = vcmp.ge.s32.totalorder %v124, 0
  %vm129 = vcmp.ge.s32.totalorder %v125, 0
  %vm130 = vcmp.lt.s32.totalorder %v122, 16
  %vm131 = vcmp.lt.s32.totalorder %v123, 16
  %vm132 = vcmp.lt.s32.totalorder %v124, 16
  %vm133 = vcmp.lt.s32.totalorder %v125, 16
  %vm134 = vmand %vm126, %vm130
  %vm135 = vmand %vm127, %vm131
  %vm136 = vmand %vm128, %vm132
  %vm137 = vmand %vm129, %vm133
  %v138 = vsel %vm134, 1, 0
  %v139 = vsel %vm135, 1, 0
  %v140 = vsel %vm136, 1, 0
  %v141 = vsel %vm137, 1, 0
  %v142 = vcvt.s32.f32 %v138
  %v143 = vcvt.s32.f32 %v139
  %v144 = vcvt.s32.f32 %v140
  %v145 = vcvt.s32.f32 %v141
  %147 = vset.pattern.permute.xlu0 0
  %148 = vperm.xlu0 %147, %v142
  %v149 = vpop.permute.xlu0 %148
  %152 = vset.pattern.permute.xlu0 0
  %153 = vperm.xlu0 %152, %v143
  %v154 = vpop.permute.xlu0 %153
  %157 = vset.pattern.permute.xlu0 0
  %158 = vperm.xlu0 %157, %v144
  %v159 = vpop.permute.xlu0 %158
  %162 = vset.pattern.permute.xlu0 0
  %163 = vperm.xlu0 %162, %v145
  %v164 = vpop.permute.xlu0 %163
  %v166 = vmul.f32 %v121, %v149
  %v167 = vmul.f32 %v120, %v154
  %v168 = vmul.f32 %v119, %v159
  %v169 = vmul.f32 %v118, %v164
  %v170 = vpack.c.bf16 %v167, %v166
  %v171 = vpack.c.bf16 %v169, %v168
  %s172 = scalar_lea.vmem %s2, 8
  %v173 = vld [vmem:[%s172] sm:$0xf]
  %v174 = vld [vmem:[%s172 + $0x4] sm:$0xf]
  %v177 = vunpack.c.l.b16 %v173
  %v178 = vunpack.c.l.b16 %v174
  %v179 = vpack.c.b16 %v178, %v177
  %vm181 = vcmask 130048
  %v183 = vsel %vm181, %v170, 0
  %v186 = vsel %vm181, %v171, 0
  %188 = vmatpush.bf16.msra.mxu0 0
  %189 = vmatpush.bf16.msra.mxu0 0
  %190 = vmatpush.bf16.msra.mxu0 0
  %191 = vmatpush.bf16.msra.mxu0 0
  %192 = vmatpush.bf16.msra.mxu0 0
  %193 = vmatpush.bf16.msra.mxu0 0
  %194 = vmatpush.bf16.msra.mxu0 0
  %195 = vmatpush.bf16.msra.mxu0 %v179
  %196 = vmatmul.bf16.gmra.mxu0 %v183
  %v197 = vpop.f32.mrf.mxu0
  %v198 = vadd.f32 0.0, %v197
  %v199 = vpop.f32.mrf.mxu0
  %v200 = vadd.f32 0.0, %v199
  %201 = vmatmul.bf16.gmra.mxu0 %v186
  %v202 = vpop.f32.mrf.mxu0
  %v203 = vadd.f32 0.0, %v202
  %v204 = vpop.f32.mrf.mxu0
  %v205 = vadd.f32 0.0, %v204
  %206 = vdwg.mxu0
  %v209 = vunpack.c.l.b16 %v111
  %v210 = vunpack.c.l.b16 %v112
  %v211 = vpack.c.b16 %v210, %v209
  %v214 = vsel %vm181, %v109, 0
  %v217 = vsel %vm181, %v110, 0
  %219 = vmatpush.bf16.msra.mxu0 0
  %220 = vmatpush.bf16.msra.mxu0 0
  %221 = vmatpush.bf16.msra.mxu0 0
  %222 = vmatpush.bf16.msra.mxu0 0
  %223 = vmatpush.bf16.msra.mxu0 0
  %224 = vmatpush.bf16.msra.mxu0 0
  %225 = vmatpush.bf16.msra.mxu0 0
  %226 = vmatpush.bf16.msra.mxu0 %v211
  %227 = vmatmul.bf16.gmra.mxu0 %v214
  %v228 = vpop.f32.mrf.mxu0
  %v229 = vadd.f32 %v198, %v228
  %v230 = vpop.f32.mrf.mxu0
  %v231 = vadd.f32 %v200, %v230
  %232 = vmatmul.bf16.gmra.mxu0 %v217
  %v233 = vpop.f32.mrf.mxu0
  %v234 = vadd.f32 %v203, %v233
  %v235 = vpop.f32.mrf.mxu0
  %v236 = vadd.f32 %v205, %v235
  %237 = vdwg.mxu0
  %v238 = vpack.c.bf16 %v47, %v46
  %v239 = vpack.c.bf16 %v49, %v48
  %s240 = scalar_lea.vmem %s2, 16
  %v241 = vld [vmem:[%s240] sm:$0xf]
  %v242 = vld [vmem:[%s240 + $0x4] sm:$0xf]
  %v245 = vunpack.c.l.b16 %v241
  %v246 = vunpack.c.l.b16 %v242
  %v247 = vpack.c.b16 %v246, %v245
  %v250 = vsel %vm181, %v238, 0
  %v253 = vsel %vm181, %v239, 0
  %255 = vmatpush.bf16.msra.mxu0 0
  %256 = vmatpush.bf16.msra.mxu0 0
  %257 = vmatpush.bf16.msra.mxu0 0
  %258 = vmatpush.bf16.msra.mxu0 0
  %259 = vmatpush.bf16.msra.mxu0 0
  %260 = vmatpush.bf16.msra.mxu0 0
  %261 = vmatpush.bf16.msra.mxu0 0
  %262 = vmatpush.bf16.msra.mxu0 %v247
  %263 = vmatmul.bf16.gmra.mxu0 %v250
  %v264 = vpop.f32.mrf.mxu0
  %v265 = vadd.f32 0.0, %v264
  %v266 = vpop.f32.mrf.mxu0
  %v267 = vadd.f32 0.0, %v266
  %268 = vmatmul.bf16.gmra.mxu0 %v253
  %v269 = vpop.f32.mrf.mxu0
  %v270 = vadd.f32 0.0, %v269
  %v271 = vpop.f32.mrf.mxu0
  %v272 = vadd.f32 0.0, %v271
  %273 = vdwg.mxu0
  %v274 = vadd.f32 %v229, %v265
  %v275 = vadd.f32 %v231, %v267
  %v276 = vadd.f32 %v234, %v270
  %v277 = vadd.f32 %v236, %v272
  %v278 = vrot.slane %v46, 1
  %v279 = vrot.slane %v47, 1
  %v280 = vrot.slane %v48, 1
  %v281 = vrot.slane %v49, 1
  %vm282 = vcmp.lt.s32.totalorder %v55, 7
  %v283 = vsel %vm282, %v280, %v281
  %v284 = vsel %vm282, %v279, %v280
  %v285 = vsel %vm282, %v278, %v279
  %v286 = vsel %vm282, %v281, %v278
  %v287 = vadd.s32 %v42, 1
  %v288 = vadd.s32 %v43, 1
  %v289 = vadd.s32 %v44, 1
  %v290 = vadd.s32 %v45, 1
  %vm291 = vcmp.ge.s32.totalorder %v287, 0
  %vm292 = vcmp.ge.s32.totalorder %v288, 0
  %vm293 = vcmp.ge.s32.totalorder %v289, 0
  %vm294 = vcmp.ge.s32.totalorder %v290, 0
  %vm295 = vcmp.lt.s32.totalorder %v287, 16
  %vm296 = vcmp.lt.s32.totalorder %v288, 16
  %vm297 = vcmp.lt.s32.totalorder %v289, 16
  %vm298 = vcmp.lt.s32.totalorder %v290, 16
  %vm299 = vmand %vm291, %vm295
  %vm300 = vmand %vm292, %vm296
  %vm301 = vmand %vm293, %vm297
  %vm302 = vmand %vm294, %vm298
  %v303 = vsel %vm299, 1, 0
  %v304 = vsel %vm300, 1, 0
  %v305 = vsel %vm301, 1, 0
  %v306 = vsel %vm302, 1, 0
  %v307 = vcvt.s32.f32 %v303
  %v308 = vcvt.s32.f32 %v304
  %v309 = vcvt.s32.f32 %v305
  %v310 = vcvt.s32.f32 %v306
  %312 = vset.pattern.permute.xlu0 0
  %313 = vperm.xlu0 %312, %v307
  %v314 = vpop.permute.xlu0 %313
  %317 = vset.pattern.permute.xlu0 0
  %318 = vperm.xlu0 %317, %v308
  %v319 = vpop.permute.xlu0 %318
  %322 = vset.pattern.permute.xlu0 0
  %323 = vperm.xlu0 %322, %v309
  %v324 = vpop.permute.xlu0 %323
  %327 = vset.pattern.permute.xlu0 0
  %328 = vperm.xlu0 %327, %v310
  %v329 = vpop.permute.xlu0 %328
  %v331 = vmul.f32 %v285, %v314
  %v332 = vmul.f32 %v284, %v319
  %v333 = vmul.f32 %v283, %v324
  %v334 = vmul.f32 %v286, %v329
  %v335 = vpack.c.bf16 %v332, %v331
  %v336 = vpack.c.bf16 %v334, %v333
  %s337 = scalar_lea.vmem %s2, 24
  %v338 = vld [vmem:[%s337] sm:$0xf]
  %v339 = vld [vmem:[%s337 + $0x4] sm:$0xf]
  %v342 = vunpack.c.l.b16 %v338
  %v343 = vunpack.c.l.b16 %v339
  %v344 = vpack.c.b16 %v343, %v342
  %v347 = vsel %vm181, %v335, 0
  %v350 = vsel %vm181, %v336, 0
  %352 = vmatpush.bf16.msra.mxu0 0
  %353 = vmatpush.bf16.msra.mxu0 0
  %354 = vmatpush.bf16.msra.mxu0 0
  %355 = vmatpush.bf16.msra.mxu0 0
  %356 = vmatpush.bf16.msra.mxu0 0
  %357 = vmatpush.bf16.msra.mxu0 0
  %358 = vmatpush.bf16.msra.mxu0 0
  %359 = vmatpush.bf16.msra.mxu0 %v344
  %360 = vmatmul.bf16.gmra.mxu0 %v347
  %v361 = vpop.f32.mrf.mxu0
  %v362 = vadd.f32 0.0, %v361
  %v363 = vpop.f32.mrf.mxu0
  %v364 = vadd.f32 0.0, %v363
  %365 = vmatmul.bf16.gmra.mxu0 %v350
  %v366 = vpop.f32.mrf.mxu0
  %v367 = vadd.f32 0.0, %v366
  %v368 = vpop.f32.mrf.mxu0
  %v369 = vadd.f32 0.0, %v368
  %370 = vdwg.mxu0
  %v371 = vadd.f32 %v274, %v362
  %v372 = vadd.f32 %v275, %v364
  %v373 = vadd.f32 %v276, %v367
  %v374 = vadd.f32 %v277, %v369
  %v375 = vrot.slane %v46, 2
  %v376 = vrot.slane %v47, 2
  %v377 = vrot.slane %v48, 2
  %v378 = vrot.slane %v49, 2
  %vm379 = vcmp.lt.s32.totalorder %v55, 6
  %v380 = vsel %vm379, %v377, %v378
  %v381 = vsel %vm379, %v376, %v377
  %v382 = vsel %vm379, %v375, %v376
  %v383 = vsel %vm379, %v378, %v375
  %v384 = vadd.s32 %v42, 2
  %v385 = vadd.s32 %v43, 2
  %v386 = vadd.s32 %v44, 2
  %v387 = vadd.s32 %v45, 2
  %vm388 = vcmp.ge.s32.totalorder %v384, 0
  %vm389 = vcmp.ge.s32.totalorder %v385, 0
  %vm390 = vcmp.ge.s32.totalorder %v386, 0
  %vm391 = vcmp.ge.s32.totalorder %v387, 0
  %vm392 = vcmp.lt.s32.totalorder %v384, 16
  %vm393 = vcmp.lt.s32.totalorder %v385, 16
  %vm394 = vcmp.lt.s32.totalorder %v386, 16
  %vm395 = vcmp.lt.s32.totalorder %v387, 16
  %vm396 = vmand %vm388, %vm392
  %vm397 = vmand %vm389, %vm393
  %vm398 = vmand %vm390, %vm394
  %vm399 = vmand %vm391, %vm395
  %v400 = vsel %vm396, 1, 0
  %v401 = vsel %vm397, 1, 0
  %v402 = vsel %vm398, 1, 0
  %v403 = vsel %vm399, 1, 0
  %v404 = vcvt.s32.f32 %v400
  %v405 = vcvt.s32.f32 %v401
  %v406 = vcvt.s32.f32 %v402
  %v407 = vcvt.s32.f32 %v403
  %409 = vset.pattern.permute.xlu0 0
  %410 = vperm.xlu0 %409, %v404
  %v411 = vpop.permute.xlu0 %410
  %414 = vset.pattern.permute.xlu0 0
  %415 = vperm.xlu0 %414, %v405
  %v416 = vpop.permute.xlu0 %415
  %419 = vset.pattern.permute.xlu0 0
  %420 = vperm.xlu0 %419, %v406
  %v421 = vpop.permute.xlu0 %420
  %424 = vset.pattern.permute.xlu0 0
  %425 = vperm.xlu0 %424, %v407
  %v426 = vpop.permute.xlu0 %425
  %v428 = vmul.f32 %v382, %v411
  %v429 = vmul.f32 %v381, %v416
  %v430 = vmul.f32 %v380, %v421
  %v431 = vmul.f32 %v383, %v426
  %v432 = vpack.c.bf16 %v429, %v428
  %v433 = vpack.c.bf16 %v431, %v430
  %s434 = scalar_lea.vmem %s2, 32
  %v435 = vld [vmem:[%s434] sm:$0xf]
  %v436 = vld [vmem:[%s434 + $0x4] sm:$0xf]
  %v439 = vunpack.c.l.b16 %v435
  %v440 = vunpack.c.l.b16 %v436
  %v441 = vpack.c.b16 %v440, %v439
  %v444 = vsel %vm181, %v432, 0
  %v447 = vsel %vm181, %v433, 0
  %449 = vmatpush.bf16.msra.mxu0 0
  %450 = vmatpush.bf16.msra.mxu0 0
  %451 = vmatpush.bf16.msra.mxu0 0
  %452 = vmatpush.bf16.msra.mxu0 0
  %453 = vmatpush.bf16.msra.mxu0 0
  %454 = vmatpush.bf16.msra.mxu0 0
  %455 = vmatpush.bf16.msra.mxu0 0
  %456 = vmatpush.bf16.msra.mxu0 %v441
  %457 = vmatmul.bf16.gmra.mxu0 %v444
  %v458 = vpop.f32.mrf.mxu0
  %v459 = vadd.f32 0.0, %v458
  %v460 = vpop.f32.mrf.mxu0
  %v461 = vadd.f32 0.0, %v460
  %462 = vmatmul.bf16.gmra.mxu0 %v447
  %v463 = vpop.f32.mrf.mxu0
  %v464 = vadd.f32 0.0, %v463
  %v465 = vpop.f32.mrf.mxu0
  %v466 = vadd.f32 0.0, %v465
  %467 = vdwg.mxu0
  %v468 = vadd.f32 %v371, %v459
  %v469 = vadd.f32 %v372, %v461
  %v470 = vadd.f32 %v373, %v464
  %v471 = vadd.f32 %v374, %v466
  %v472 = vld [vmem:[%s3] sm:$0x1]
  %v474 = vperm.slane %v472, 0
  %v476 = vadd.f32 %v468, %v474
  %v477 = vadd.f32 %v469, %v474
  %v478 = vadd.f32 %v470, %v474
  %v479 = vadd.f32 %v471, %v474
  %v480 = vmax.f32 %v476, 0.0
  %v481 = vmax.f32 %v477, 0.0
  %v482 = vmax.f32 %v478, 0.0
  %v483 = vmax.f32 %v479, 0.0
  %v484 = vrot.slane %v480, 6
  %v485 = vrot.slane %v481, 6
  %v486 = vrot.slane %v482, 6
  %v487 = vrot.slane %v483, 6
  %v488 = vsel %vm56, %v486, %v487
  %v489 = vsel %vm56, %v485, %v486
  %v490 = vsel %vm56, %v484, %v485
  %v491 = vsel %vm56, %v487, %v484
  %v492 = vmul.f32 %v491, %v88
  %v493 = vmul.f32 %v490, %v93
  %v494 = vmul.f32 %v489, %v98
  %v495 = vmul.f32 %v488, %v103
  %v496 = vrot.slane %v480, 2
  %v497 = vrot.slane %v481, 2
  %v498 = vrot.slane %v482, 2
  %v499 = vrot.slane %v483, 2
  %v500 = vsel %vm379, %v498, %v499
  %v501 = vsel %vm379, %v497, %v498
  %v502 = vsel %vm379, %v496, %v497
  %v503 = vsel %vm379, %v499, %v496
  %v504 = vmul.f32 %v502, %v411
  %v505 = vmul.f32 %v501, %v416
  %v506 = vmul.f32 %v500, %v421
  %v507 = vmul.f32 %v503, %v426
  %v508 = vpack.c.bf16 %v493, %v492
  %v509 = vpack.c.bf16 %v481, %v480
  %v510 = vpack.c.bf16 %v505, %v504
  %v511 = vpack.c.bf16 %v495, %v494
  %v512 = vpack.c.bf16 %v483, %v482
  %v513 = vpack.c.bf16 %v507, %v506
  %v514 = vld [vmem:[%s4] sm:$0xf]
  %v515 = vld [vmem:[%s4 + $0x4] sm:$0xf]
  %v516 = vld [vmem:[%s4 + $0x8] sm:$0xf]
  %v517 = vld [vmem:[%s4 + $0xc] sm:$0xf]
  %v518 = vld [vmem:[%s4 + $0x10] sm:$0xf]
  %v519 = vld [vmem:[%s4 + $0x14] sm:$0xf]
  %v520 = vld [vmem:[%s4 + $0x18] sm:$0xf]
  %v521 = vld [vmem:[%s4 + $0x1c] sm:$0xf]
  %v522 = vld [vmem:[%s4 + $0x20] sm:$0xf]
  %v523 = vld [vmem:[%s4 + $0x24] sm:$0xf]
  %v524 = vld [vmem:[%s4 + $0x28] sm:$0xf]
  %v525 = vld [vmem:[%s4 + $0x2c] sm:$0xf]
  %v526 = vld [vmem:[%s4 + $0x30] sm:$0xf]
  %v527 = vld [vmem:[%s4 + $0x34] sm:$0xf]
  %v528 = vld [vmem:[%s4 + $0x38] sm:$0xf]
  %v529 = vld [vmem:[%s4 + $0x3c] sm:$0xf]
  %v530 = vld [vmem:[%s4 + $0x40] sm:$0xf]
  %v531 = vld [vmem:[%s4 + $0x44] sm:$0xf]
  %v532 = vld [vmem:[%s4 + $0x48] sm:$0xf]
  %v533 = vld [vmem:[%s4 + $0x4c] sm:$0xf]
  %v534 = vld [vmem:[%s4 + $0x50] sm:$0xf]
  %v535 = vld [vmem:[%s4 + $0x54] sm:$0xf]
  %v536 = vld [vmem:[%s4 + $0x58] sm:$0xf]
  %v537 = vld [vmem:[%s4 + $0x5c] sm:$0xf]
  %v538 = vld [vmem:[%s4 + $0x60] sm:$0xf]
  %v539 = vld [vmem:[%s4 + $0x64] sm:$0xf]
  %v540 = vld [vmem:[%s4 + $0x68] sm:$0xf]
  %v541 = vld [vmem:[%s4 + $0x6c] sm:$0xf]
  %v542 = vld [vmem:[%s4 + $0x70] sm:$0xf]
  %v543 = vld [vmem:[%s4 + $0x74] sm:$0xf]
  %v544 = vld [vmem:[%s4 + $0x78] sm:$0xf]
  %v545 = vld [vmem:[%s4 + $0x7c] sm:$0xf]
  %v546 = vld [vmem:[%s4 + $0x80] sm:$0xf]
  %v547 = vld [vmem:[%s4 + $0x84] sm:$0xf]
  %v548 = vld [vmem:[%s4 + $0x88] sm:$0xf]
  %v549 = vld [vmem:[%s4 + $0x8c] sm:$0xf]
  %v550 = vld [vmem:[%s4 + $0x90] sm:$0xf]
  %v551 = vld [vmem:[%s4 + $0x94] sm:$0xf]
  %v552 = vld [vmem:[%s4 + $0x98] sm:$0xf]
  %v553 = vld [vmem:[%s4 + $0x9c] sm:$0xf]
  %v554 = vld [vmem:[%s4 + $0xa0] sm:$0xf]
  %v555 = vld [vmem:[%s4 + $0xa4] sm:$0xf]
  %v556 = vld [vmem:[%s4 + $0xa8] sm:$0xf]
  %v557 = vld [vmem:[%s4 + $0xac] sm:$0xf]
  %v558 = vld [vmem:[%s4 + $0xb0] sm:$0xf]
  %v559 = vld [vmem:[%s4 + $0xb4] sm:$0xf]
  %v560 = vld [vmem:[%s4 + $0xb8] sm:$0xf]
  %v561 = vld [vmem:[%s4 + $0xbc] sm:$0xf]
  %v562 = vld [vmem:[%s5] sm:$0x1]
  %v564 = vperm.slane %v562, 0
  %v614 = vunpack.c.l.b16 %v514
  %v615 = vunpack.c.l.b16 %v515
  %v616 = vunpack.c.l.b16 %v516
  %v617 = vunpack.c.l.b16 %v517
  %v618 = vunpack.c.l.b16 %v518
  %v619 = vunpack.c.l.b16 %v519
  %v620 = vunpack.c.l.b16 %v520
  %v621 = vunpack.c.l.b16 %v521
  %v622 = vunpack.c.l.b16 %v522
  %v623 = vunpack.c.l.b16 %v523
  %v624 = vunpack.c.l.b16 %v524
  %v625 = vunpack.c.l.b16 %v525
  %v626 = vunpack.c.l.b16 %v526
  %v627 = vunpack.c.l.b16 %v527
  %v628 = vunpack.c.l.b16 %v528
  %v629 = vunpack.c.l.b16 %v529
  %v630 = vunpack.c.l.b16 %v530
  %v631 = vunpack.c.l.b16 %v531
  %v632 = vunpack.c.l.b16 %v532
  %v633 = vunpack.c.l.b16 %v533
  %v634 = vunpack.c.l.b16 %v534
  %v635 = vunpack.c.l.b16 %v535
  %v636 = vunpack.c.l.b16 %v536
  %v637 = vunpack.c.l.b16 %v537
  %v638 = vunpack.c.l.b16 %v538
  %v639 = vunpack.c.l.b16 %v539
  %v640 = vunpack.c.l.b16 %v540
  %v641 = vunpack.c.l.b16 %v541
  %v642 = vunpack.c.l.b16 %v542
  %v643 = vunpack.c.l.b16 %v543
  %v644 = vunpack.c.l.b16 %v544
  %v645 = vunpack.c.l.b16 %v545
  %v646 = vunpack.c.l.b16 %v546
  %v647 = vunpack.c.l.b16 %v547
  %v648 = vunpack.c.l.b16 %v548
  %v649 = vunpack.c.l.b16 %v549
  %v650 = vunpack.c.l.b16 %v550
  %v651 = vunpack.c.l.b16 %v551
  %v652 = vunpack.c.l.b16 %v552
  %v653 = vunpack.c.l.b16 %v553
  %v654 = vunpack.c.l.b16 %v554
  %v655 = vunpack.c.l.b16 %v555
  %v656 = vunpack.c.l.b16 %v556
  %v657 = vunpack.c.l.b16 %v557
  %v658 = vunpack.c.l.b16 %v558
  %v659 = vunpack.c.l.b16 %v559
  %v660 = vunpack.c.l.b16 %v560
  %v661 = vunpack.c.l.b16 %v561
  %v662 = vpack.c.b16 %v615, %v614
  %v663 = vpack.c.b16 %v617, %v616
  %v664 = vpack.c.b16 %v619, %v618
  %v665 = vpack.c.b16 %v621, %v620
  %v666 = vpack.c.b16 %v623, %v622
  %v667 = vpack.c.b16 %v625, %v624
  %v668 = vpack.c.b16 %v627, %v626
  %v669 = vpack.c.b16 %v629, %v628
  %v670 = vpack.c.b16 %v631, %v630
  %v671 = vpack.c.b16 %v633, %v632
  %v672 = vpack.c.b16 %v635, %v634
  %v673 = vpack.c.b16 %v637, %v636
  %v674 = vpack.c.b16 %v639, %v638
  %v675 = vpack.c.b16 %v641, %v640
  %v676 = vpack.c.b16 %v643, %v642
  %v677 = vpack.c.b16 %v645, %v644
  %v678 = vpack.c.b16 %v647, %v646
  %v679 = vpack.c.b16 %v649, %v648
  %v680 = vpack.c.b16 %v651, %v650
  %v681 = vpack.c.b16 %v653, %v652
  %v682 = vpack.c.b16 %v655, %v654
  %v683 = vpack.c.b16 %v657, %v656
  %v684 = vpack.c.b16 %v659, %v658
  %v685 = vpack.c.b16 %v661, %v660
  %710 = vmatpush.bf16.msra.mxu0 %v669
  %711 = vmatpush.bf16.msra.mxu0 %v668
  %712 = vmatpush.bf16.msra.mxu0 %v667
  %713 = vmatpush.bf16.msra.mxu0 %v666
  %714 = vmatpush.bf16.msra.mxu0 %v665
  %715 = vmatpush.bf16.msra.mxu0 %v664
  %716 = vmatpush.bf16.msra.mxu0 %v663
  %717 = vmatpush.bf16.msra.mxu0 %v662
  %718 = vmatmul.bf16.gmra.mxu0 %v508
  %v719 = vpop.f32.mrf.mxu0
  %v720 = vadd.f32 %v564, %v719
  %v721 = vpop.f32.mrf.mxu0
  %v722 = vadd.f32 %v564, %v721
  %723 = vmatmul.bf16.gmra.mxu0 %v511
  %v724 = vpop.f32.mrf.mxu0
  %v725 = vadd.f32 %v564, %v724
  %v726 = vpop.f32.mrf.mxu0
  %v727 = vadd.f32 %v564, %v726
  %728 = vdwg.mxu0
  %729 = vmatpush.bf16.msra.mxu0 %v677
  %730 = vmatpush.bf16.msra.mxu0 %v676
  %731 = vmatpush.bf16.msra.mxu0 %v675
  %732 = vmatpush.bf16.msra.mxu0 %v674
  %733 = vmatpush.bf16.msra.mxu0 %v673
  %734 = vmatpush.bf16.msra.mxu0 %v672
  %735 = vmatpush.bf16.msra.mxu0 %v671
  %736 = vmatpush.bf16.msra.mxu0 %v670
  %737 = vmatmul.bf16.gmra.mxu0 %v509
  %v738 = vpop.f32.mrf.mxu0
  %v739 = vadd.f32 %v720, %v738
  %v740 = vpop.f32.mrf.mxu0
  %v741 = vadd.f32 %v722, %v740
  %742 = vmatmul.bf16.gmra.mxu0 %v512
  %v743 = vpop.f32.mrf.mxu0
  %v744 = vadd.f32 %v725, %v743
  %v745 = vpop.f32.mrf.mxu0
  %v746 = vadd.f32 %v727, %v745
  %747 = vdwg.mxu0
  %748 = vmatpush.bf16.msra.mxu0 %v685
  %749 = vmatpush.bf16.msra.mxu0 %v684
  %750 = vmatpush.bf16.msra.mxu0 %v683
  %751 = vmatpush.bf16.msra.mxu0 %v682
  %752 = vmatpush.bf16.msra.mxu0 %v681
  %753 = vmatpush.bf16.msra.mxu0 %v680
  %754 = vmatpush.bf16.msra.mxu0 %v679
  %755 = vmatpush.bf16.msra.mxu0 %v678
  %756 = vmatmul.bf16.gmra.mxu0 %v510
  %v757 = vpop.f32.mrf.mxu0
  %v758 = vadd.f32 %v739, %v757
  %v759 = vpop.f32.mrf.mxu0
  %v760 = vadd.f32 %v741, %v759
  %761 = vmatmul.bf16.gmra.mxu0 %v513
  %v762 = vpop.f32.mrf.mxu0
  %v763 = vadd.f32 %v744, %v762
  %v764 = vpop.f32.mrf.mxu0
  %v765 = vadd.f32 %v746, %v764
  %766 = vdwg.mxu0
  %v767 = vmax.f32 %v758, 0.0
  %v768 = vmax.f32 %v760, 0.0
  %v769 = vmax.f32 %v763, 0.0
  %v770 = vmax.f32 %v765, 0.0
  %v771 = vrot.slane %v767, 5
  %v772 = vrot.slane %v768, 5
  %v773 = vrot.slane %v769, 5
  %v774 = vrot.slane %v770, 5
  %vm775 = vcmp.lt.s32.totalorder %v55, 3
  %v776 = vsel %vm775, %v773, %v774
  %v777 = vsel %vm775, %v772, %v773
  %v778 = vsel %vm775, %v771, %v772
  %v779 = vsel %vm775, %v774, %v771
  %v780 = vadd.s32 %v42, 4294967293
  %v781 = vadd.s32 %v43, 4294967293
  %v782 = vadd.s32 %v44, 4294967293
  %v783 = vadd.s32 %v45, 4294967293
  %vm784 = vcmp.ge.s32.totalorder %v780, 0
  %vm785 = vcmp.ge.s32.totalorder %v781, 0
  %vm786 = vcmp.ge.s32.totalorder %v782, 0
  %vm787 = vcmp.ge.s32.totalorder %v783, 0
  %vm788 = vcmp.lt.s32.totalorder %v780, 16
  %vm789 = vcmp.lt.s32.totalorder %v781, 16
  %vm790 = vcmp.lt.s32.totalorder %v782, 16
  %vm791 = vcmp.lt.s32.totalorder %v783, 16
  %vm792 = vmand %vm784, %vm788
  %vm793 = vmand %vm785, %vm789
  %vm794 = vmand %vm786, %vm790
  %vm795 = vmand %vm787, %vm791
  %v796 = vsel %vm792, 1, 0
  %v797 = vsel %vm793, 1, 0
  %v798 = vsel %vm794, 1, 0
  %v799 = vsel %vm795, 1, 0
  %v800 = vcvt.s32.f32 %v796
  %v801 = vcvt.s32.f32 %v797
  %v802 = vcvt.s32.f32 %v798
  %v803 = vcvt.s32.f32 %v799
  %805 = vset.pattern.permute.xlu0 0
  %806 = vperm.xlu0 %805, %v800
  %v807 = vpop.permute.xlu0 %806
  %810 = vset.pattern.permute.xlu0 0
  %811 = vperm.xlu0 %810, %v801
  %v812 = vpop.permute.xlu0 %811
  %815 = vset.pattern.permute.xlu0 0
  %816 = vperm.xlu0 %815, %v802
  %v817 = vpop.permute.xlu0 %816
  %820 = vset.pattern.permute.xlu0 0
  %821 = vperm.xlu0 %820, %v803
  %v822 = vpop.permute.xlu0 %821
  %v824 = vmul.f32 %v779, %v807
  %v825 = vmul.f32 %v778, %v812
  %v826 = vmul.f32 %v777, %v817
  %v827 = vmul.f32 %v776, %v822
  %v828 = vrot.slane %v767, 3
  %v829 = vrot.slane %v768, 3
  %v830 = vrot.slane %v769, 3
  %v831 = vrot.slane %v770, 3
  %vm832 = vcmp.lt.s32.totalorder %v55, 5
  %v833 = vsel %vm832, %v830, %v831
  %v834 = vsel %vm832, %v829, %v830
  %v835 = vsel %vm832, %v828, %v829
  %v836 = vsel %vm832, %v831, %v828
  %v837 = vadd.s32 %v42, 3
  %v838 = vadd.s32 %v43, 3
  %v839 = vadd.s32 %v44, 3
  %v840 = vadd.s32 %v45, 3
  %vm841 = vcmp.ge.s32.totalorder %v837, 0
  %vm842 = vcmp.ge.s32.totalorder %v838, 0
  %vm843 = vcmp.ge.s32.totalorder %v839, 0
  %vm844 = vcmp.ge.s32.totalorder %v840, 0
  %vm845 = vcmp.lt.s32.totalorder %v837, 16
  %vm846 = vcmp.lt.s32.totalorder %v838, 16
  %vm847 = vcmp.lt.s32.totalorder %v839, 16
  %vm848 = vcmp.lt.s32.totalorder %v840, 16
  %vm849 = vmand %vm841, %vm845
  %vm850 = vmand %vm842, %vm846
  %vm851 = vmand %vm843, %vm847
  %vm852 = vmand %vm844, %vm848
  %v853 = vsel %vm849, 1, 0
  %v854 = vsel %vm850, 1, 0
  %v855 = vsel %vm851, 1, 0
  %v856 = vsel %vm852, 1, 0
  %v857 = vcvt.s32.f32 %v853
  %v858 = vcvt.s32.f32 %v854
  %v859 = vcvt.s32.f32 %v855
  %v860 = vcvt.s32.f32 %v856
  %862 = vset.pattern.permute.xlu0 0
  %863 = vperm.xlu0 %862, %v857
  %v864 = vpop.permute.xlu0 %863
  %867 = vset.pattern.permute.xlu0 0
  %868 = vperm.xlu0 %867, %v858
  %v869 = vpop.permute.xlu0 %868
  %872 = vset.pattern.permute.xlu0 0
  %873 = vperm.xlu0 %872, %v859
  %v874 = vpop.permute.xlu0 %873
  %877 = vset.pattern.permute.xlu0 0
  %878 = vperm.xlu0 %877, %v860
  %v879 = vpop.permute.xlu0 %878
  %v881 = vmul.f32 %v835, %v864
  %v882 = vmul.f32 %v834, %v869
  %v883 = vmul.f32 %v833, %v874
  %v884 = vmul.f32 %v836, %v879
  %v885 = vpack.c.bf16 %v825, %v824
  %v886 = vpack.c.bf16 %v768, %v767
  %v887 = vpack.c.bf16 %v882, %v881
  %v888 = vpack.c.bf16 %v827, %v826
  %v889 = vpack.c.bf16 %v770, %v769
  %v890 = vpack.c.bf16 %v884, %v883
  %v891 = vld [vmem:[%s6] sm:$0xf]
  %v892 = vld [vmem:[%s6 + $0x4] sm:$0xf]
  %v893 = vld [vmem:[%s6 + $0x8] sm:$0xf]
  %v894 = vld [vmem:[%s6 + $0xc] sm:$0xf]
  %v895 = vld [vmem:[%s6 + $0x10] sm:$0xf]
  %v896 = vld [vmem:[%s6 + $0x14] sm:$0xf]
  %v897 = vld [vmem:[%s6 + $0x18] sm:$0xf]
  %v898 = vld [vmem:[%s6 + $0x1c] sm:$0xf]
  %v899 = vld [vmem:[%s6 + $0x20] sm:$0xf]
  %v900 = vld [vmem:[%s6 + $0x24] sm:$0xf]
  %v901 = vld [vmem:[%s6 + $0x28] sm:$0xf]
  %v902 = vld [vmem:[%s6 + $0x2c] sm:$0xf]
  %v903 = vld [vmem:[%s6 + $0x30] sm:$0xf]
  %v904 = vld [vmem:[%s6 + $0x34] sm:$0xf]
  %v905 = vld [vmem:[%s6 + $0x38] sm:$0xf]
  %v906 = vld [vmem:[%s6 + $0x3c] sm:$0xf]
  %v907 = vld [vmem:[%s6 + $0x40] sm:$0xf]
  %v908 = vld [vmem:[%s6 + $0x44] sm:$0xf]
  %v909 = vld [vmem:[%s6 + $0x48] sm:$0xf]
  %v910 = vld [vmem:[%s6 + $0x4c] sm:$0xf]
  %v911 = vld [vmem:[%s6 + $0x50] sm:$0xf]
  %v912 = vld [vmem:[%s6 + $0x54] sm:$0xf]
  %v913 = vld [vmem:[%s6 + $0x58] sm:$0xf]
  %v914 = vld [vmem:[%s6 + $0x5c] sm:$0xf]
  %v915 = vld [vmem:[%s6 + $0x60] sm:$0xf]
  %v916 = vld [vmem:[%s6 + $0x64] sm:$0xf]
  %v917 = vld [vmem:[%s6 + $0x68] sm:$0xf]
  %v918 = vld [vmem:[%s6 + $0x6c] sm:$0xf]
  %v919 = vld [vmem:[%s6 + $0x70] sm:$0xf]
  %v920 = vld [vmem:[%s6 + $0x74] sm:$0xf]
  %v921 = vld [vmem:[%s6 + $0x78] sm:$0xf]
  %v922 = vld [vmem:[%s6 + $0x7c] sm:$0xf]
  %v923 = vld [vmem:[%s6 + $0x80] sm:$0xf]
  %v924 = vld [vmem:[%s6 + $0x84] sm:$0xf]
  %v925 = vld [vmem:[%s6 + $0x88] sm:$0xf]
  %v926 = vld [vmem:[%s6 + $0x8c] sm:$0xf]
  %v927 = vld [vmem:[%s6 + $0x90] sm:$0xf]
  %v928 = vld [vmem:[%s6 + $0x94] sm:$0xf]
  %v929 = vld [vmem:[%s6 + $0x98] sm:$0xf]
  %v930 = vld [vmem:[%s6 + $0x9c] sm:$0xf]
  %v931 = vld [vmem:[%s6 + $0xa0] sm:$0xf]
  %v932 = vld [vmem:[%s6 + $0xa4] sm:$0xf]
  %v933 = vld [vmem:[%s6 + $0xa8] sm:$0xf]
  %v934 = vld [vmem:[%s6 + $0xac] sm:$0xf]
  %v935 = vld [vmem:[%s6 + $0xb0] sm:$0xf]
  %v936 = vld [vmem:[%s6 + $0xb4] sm:$0xf]
  %v937 = vld [vmem:[%s6 + $0xb8] sm:$0xf]
  %v938 = vld [vmem:[%s6 + $0xbc] sm:$0xf]
  %v939 = vld [vmem:[%s7] sm:$0x1]
  %v941 = vperm.slane %v939, 0
  %v991 = vunpack.c.l.b16 %v891
  %v992 = vunpack.c.l.b16 %v892
  %v993 = vunpack.c.l.b16 %v893
  %v994 = vunpack.c.l.b16 %v894
  %v995 = vunpack.c.l.b16 %v895
  %v996 = vunpack.c.l.b16 %v896
  %v997 = vunpack.c.l.b16 %v897
  %v998 = vunpack.c.l.b16 %v898
  %v999 = vunpack.c.l.b16 %v899
  %v1000 = vunpack.c.l.b16 %v900
  %v1001 = vunpack.c.l.b16 %v901
  %v1002 = vunpack.c.l.b16 %v902
  %v1003 = vunpack.c.l.b16 %v903
  %v1004 = vunpack.c.l.b16 %v904
  %v1005 = vunpack.c.l.b16 %v905
  %v1006 = vunpack.c.l.b16 %v906
  %v1007 = vunpack.c.l.b16 %v907
  %v1008 = vunpack.c.l.b16 %v908
  %v1009 = vunpack.c.l.b16 %v909
  %v1010 = vunpack.c.l.b16 %v910
  %v1011 = vunpack.c.l.b16 %v911
  %v1012 = vunpack.c.l.b16 %v912
  %v1013 = vunpack.c.l.b16 %v913
  %v1014 = vunpack.c.l.b16 %v914
  %v1015 = vunpack.c.l.b16 %v915
  %v1016 = vunpack.c.l.b16 %v916
  %v1017 = vunpack.c.l.b16 %v917
  %v1018 = vunpack.c.l.b16 %v918
  %v1019 = vunpack.c.l.b16 %v919
  %v1020 = vunpack.c.l.b16 %v920
  %v1021 = vunpack.c.l.b16 %v921
  %v1022 = vunpack.c.l.b16 %v922
  %v1023 = vunpack.c.l.b16 %v923
  %v1024 = vunpack.c.l.b16 %v924
  %v1025 = vunpack.c.l.b16 %v925
  %v1026 = vunpack.c.l.b16 %v926
  %v1027 = vunpack.c.l.b16 %v927
  %v1028 = vunpack.c.l.b16 %v928
  %v1029 = vunpack.c.l.b16 %v929
  %v1030 = vunpack.c.l.b16 %v930
  %v1031 = vunpack.c.l.b16 %v931
  %v1032 = vunpack.c.l.b16 %v932
  %v1033 = vunpack.c.l.b16 %v933
  %v1034 = vunpack.c.l.b16 %v934
  %v1035 = vunpack.c.l.b16 %v935
  %v1036 = vunpack.c.l.b16 %v936
  %v1037 = vunpack.c.l.b16 %v937
  %v1038 = vunpack.c.l.b16 %v938
  %v1039 = vpack.c.b16 %v992, %v991
  %v1040 = vpack.c.b16 %v994, %v993
  %v1041 = vpack.c.b16 %v996, %v995
  %v1042 = vpack.c.b16 %v998, %v997
  %v1043 = vpack.c.b16 %v1000, %v999
  %v1044 = vpack.c.b16 %v1002, %v1001
  %v1045 = vpack.c.b16 %v1004, %v1003
  %v1046 = vpack.c.b16 %v1006, %v1005
  %v1047 = vpack.c.b16 %v1008, %v1007
  %v1048 = vpack.c.b16 %v1010, %v1009
  %v1049 = vpack.c.b16 %v1012, %v1011
  %v1050 = vpack.c.b16 %v1014, %v1013
  %v1051 = vpack.c.b16 %v1016, %v1015
  %v1052 = vpack.c.b16 %v1018, %v1017
  %v1053 = vpack.c.b16 %v1020, %v1019
  %v1054 = vpack.c.b16 %v1022, %v1021
  %v1055 = vpack.c.b16 %v1024, %v1023
  %v1056 = vpack.c.b16 %v1026, %v1025
  %v1057 = vpack.c.b16 %v1028, %v1027
  %v1058 = vpack.c.b16 %v1030, %v1029
  %v1059 = vpack.c.b16 %v1032, %v1031
  %v1060 = vpack.c.b16 %v1034, %v1033
  %v1061 = vpack.c.b16 %v1036, %v1035
  %v1062 = vpack.c.b16 %v1038, %v1037
  %1087 = vmatpush.bf16.msra.mxu0 %v1046
  %1088 = vmatpush.bf16.msra.mxu0 %v1045
  %1089 = vmatpush.bf16.msra.mxu0 %v1044
  %1090 = vmatpush.bf16.msra.mxu0 %v1043
  %1091 = vmatpush.bf16.msra.mxu0 %v1042
  %1092 = vmatpush.bf16.msra.mxu0 %v1041
  %1093 = vmatpush.bf16.msra.mxu0 %v1040
  %1094 = vmatpush.bf16.msra.mxu0 %v1039
  %1095 = vmatmul.bf16.gmra.mxu0 %v885
  %v1096 = vpop.f32.mrf.mxu0
  %v1097 = vadd.f32 %v941, %v1096
  %v1098 = vpop.f32.mrf.mxu0
  %v1099 = vadd.f32 %v941, %v1098
  %1100 = vmatmul.bf16.gmra.mxu0 %v888
  %v1101 = vpop.f32.mrf.mxu0
  %v1102 = vadd.f32 %v941, %v1101
  %v1103 = vpop.f32.mrf.mxu0
  %v1104 = vadd.f32 %v941, %v1103
  %1105 = vdwg.mxu0
  %1106 = vmatpush.bf16.msra.mxu0 %v1054
  %1107 = vmatpush.bf16.msra.mxu0 %v1053
  %1108 = vmatpush.bf16.msra.mxu0 %v1052
  %1109 = vmatpush.bf16.msra.mxu0 %v1051
  %1110 = vmatpush.bf16.msra.mxu0 %v1050
  %1111 = vmatpush.bf16.msra.mxu0 %v1049
  %1112 = vmatpush.bf16.msra.mxu0 %v1048
  %1113 = vmatpush.bf16.msra.mxu0 %v1047
  %1114 = vmatmul.bf16.gmra.mxu0 %v886
  %v1115 = vpop.f32.mrf.mxu0
  %v1116 = vadd.f32 %v1097, %v1115
  %v1117 = vpop.f32.mrf.mxu0
  %v1118 = vadd.f32 %v1099, %v1117
  %1119 = vmatmul.bf16.gmra.mxu0 %v889
  %v1120 = vpop.f32.mrf.mxu0
  %v1121 = vadd.f32 %v1102, %v1120
  %v1122 = vpop.f32.mrf.mxu0
  %v1123 = vadd.f32 %v1104, %v1122
  %1124 = vdwg.mxu0
  %1125 = vmatpush.bf16.msra.mxu0 %v1062
  %1126 = vmatpush.bf16.msra.mxu0 %v1061
  %1127 = vmatpush.bf16.msra.mxu0 %v1060
  %1128 = vmatpush.bf16.msra.mxu0 %v1059
  %1129 = vmatpush.bf16.msra.mxu0 %v1058
  %1130 = vmatpush.bf16.msra.mxu0 %v1057
  %1131 = vmatpush.bf16.msra.mxu0 %v1056
  %1132 = vmatpush.bf16.msra.mxu0 %v1055
  %1133 = vmatmul.bf16.gmra.mxu0 %v887
  %v1134 = vpop.f32.mrf.mxu0
  %v1135 = vadd.f32 %v1116, %v1134
  %v1136 = vpop.f32.mrf.mxu0
  %v1137 = vadd.f32 %v1118, %v1136
  %1138 = vmatmul.bf16.gmra.mxu0 %v890
  %v1139 = vpop.f32.mrf.mxu0
  %v1140 = vadd.f32 %v1121, %v1139
  %v1141 = vpop.f32.mrf.mxu0
  %v1142 = vadd.f32 %v1123, %v1141
  %1143 = vdwg.mxu0
  %v1144 = vmax.f32 %v1135, 0.0
  %v1145 = vmax.f32 %v1137, 0.0
  %v1146 = vmax.f32 %v1140, 0.0
  %v1147 = vmax.f32 %v1142, 0.0
  %v1148 = vpack.c.bf16 %v1145, %v1144
  %v1149 = vpack.c.bf16 %v1147, %v1146
  %v1150 = vld [vmem:[%s8] sm:$0xf]
  %v1151 = vld [vmem:[%s8 + $0x4] sm:$0xf]
  %v1152 = vld [vmem:[%s8 + $0x8] sm:$0xf]
  %v1153 = vld [vmem:[%s8 + $0xc] sm:$0xf]
  %v1154 = vld [vmem:[%s8 + $0x10] sm:$0xf]
  %v1155 = vld [vmem:[%s8 + $0x14] sm:$0xf]
  %v1156 = vld [vmem:[%s8 + $0x18] sm:$0xf]
  %v1157 = vld [vmem:[%s8 + $0x1c] sm:$0xf]
  %v1158 = vld [vmem:[%s8 + $0x20] sm:$0xf]
  %v1159 = vld [vmem:[%s8 + $0x24] sm:$0xf]
  %v1160 = vld [vmem:[%s8 + $0x28] sm:$0xf]
  %v1161 = vld [vmem:[%s8 + $0x2c] sm:$0xf]
  %v1162 = vld [vmem:[%s8 + $0x30] sm:$0xf]
  %v1163 = vld [vmem:[%s8 + $0x34] sm:$0xf]
  %v1164 = vld [vmem:[%s8 + $0x38] sm:$0xf]
  %v1165 = vld [vmem:[%s8 + $0x3c] sm:$0xf]
  %v1166 = vld [vmem:[%s9] sm:$0x1]
  %v1168 = vperm.slane %v1166, 0
  %v1186 = vunpack.c.l.b16 %v1150
  %v1187 = vunpack.c.l.b16 %v1151
  %v1188 = vunpack.c.l.b16 %v1152
  %v1189 = vunpack.c.l.b16 %v1153
  %v1190 = vunpack.c.l.b16 %v1154
  %v1191 = vunpack.c.l.b16 %v1155
  %v1192 = vunpack.c.l.b16 %v1156
  %v1193 = vunpack.c.l.b16 %v1157
  %v1194 = vunpack.c.l.b16 %v1158
  %v1195 = vunpack.c.l.b16 %v1159
  %v1196 = vunpack.c.l.b16 %v1160
  %v1197 = vunpack.c.l.b16 %v1161
  %v1198 = vunpack.c.l.b16 %v1162
  %v1199 = vunpack.c.l.b16 %v1163
  %v1200 = vunpack.c.l.b16 %v1164
  %v1201 = vunpack.c.l.b16 %v1165
  %v1202 = vpack.c.b16 %v1187, %v1186
  %v1203 = vpack.c.b16 %v1189, %v1188
  %v1204 = vpack.c.b16 %v1191, %v1190
  %v1205 = vpack.c.b16 %v1193, %v1192
  %v1206 = vpack.c.b16 %v1195, %v1194
  %v1207 = vpack.c.b16 %v1197, %v1196
  %v1208 = vpack.c.b16 %v1199, %v1198
  %v1209 = vpack.c.b16 %v1201, %v1200
  %1218 = vmatpush.bf16.msra.mxu0 %v1209
  %1219 = vmatpush.bf16.msra.mxu0 %v1208
  %1220 = vmatpush.bf16.msra.mxu0 %v1207
  %1221 = vmatpush.bf16.msra.mxu0 %v1206
  %1222 = vmatpush.bf16.msra.mxu0 %v1205
  %1223 = vmatpush.bf16.msra.mxu0 %v1204
  %1224 = vmatpush.bf16.msra.mxu0 %v1203
  %1225 = vmatpush.bf16.msra.mxu0 %v1202
  %1226 = vmatmul.bf16.gmra.mxu0 %v1148
  %v1227 = vpop.f32.mrf.mxu0
  %v1228 = vadd.f32 %v1168, %v1227
  %v1229 = vpop.f32.mrf.mxu0
  %v1230 = vadd.f32 %v1168, %v1229
  %1231 = vmatmul.bf16.gmra.mxu0 %v1149
  %v1232 = vpop.f32.mrf.mxu0
  %v1233 = vadd.f32 %v1168, %v1232
  %v1234 = vpop.f32.mrf.mxu0
  %v1235 = vadd.f32 %v1168, %v1234
  %1236 = vdwg.mxu0
  %v1237 = vmax.f32 %v1228, 0.0
  %v1238 = vmax.f32 %v1230, 0.0
  %v1239 = vmax.f32 %v1233, 0.0
  %v1240 = vmax.f32 %v1235, 0.0
  %v1241 = vpack.c.bf16 %v1238, %v1237
  %v1242 = vpack.c.bf16 %v1240, %v1239
  %v1243 = vld [vmem:[%s10] sm:$0xf]
  %v1244 = vld [vmem:[%s10 + $0x4] sm:$0xf]
  %v1245 = vld [vmem:[%s10 + $0x8] sm:$0xf]
  %v1246 = vld [vmem:[%s10 + $0xc] sm:$0xf]
  %v1247 = vld [vmem:[%s10 + $0x10] sm:$0xf]
  %v1248 = vld [vmem:[%s10 + $0x14] sm:$0xf]
  %v1249 = vld [vmem:[%s10 + $0x18] sm:$0xf]
  %v1250 = vld [vmem:[%s10 + $0x1c] sm:$0xf]
  %v1251 = vld [vmem:[%s10 + $0x20] sm:$0xf]
  %v1252 = vld [vmem:[%s10 + $0x24] sm:$0xf]
  %v1253 = vld [vmem:[%s10 + $0x28] sm:$0xf]
  %v1254 = vld [vmem:[%s10 + $0x2c] sm:$0xf]
  %v1255 = vld [vmem:[%s10 + $0x30] sm:$0xf]
  %v1256 = vld [vmem:[%s10 + $0x34] sm:$0xf]
  %v1257 = vld [vmem:[%s10 + $0x38] sm:$0xf]
  %v1258 = vld [vmem:[%s10 + $0x3c] sm:$0xf]
  %v1259 = vld [vmem:[%s11] sm:$0x1]
  %v1261 = vperm.slane %v1259, 0
  %v1279 = vunpack.c.l.b16 %v1243
  %v1280 = vunpack.c.l.b16 %v1244
  %v1281 = vunpack.c.l.b16 %v1245
  %v1282 = vunpack.c.l.b16 %v1246
  %v1283 = vunpack.c.l.b16 %v1247
  %v1284 = vunpack.c.l.b16 %v1248
  %v1285 = vunpack.c.l.b16 %v1249
  %v1286 = vunpack.c.l.b16 %v1250
  %v1287 = vunpack.c.l.b16 %v1251
  %v1288 = vunpack.c.l.b16 %v1252
  %v1289 = vunpack.c.l.b16 %v1253
  %v1290 = vunpack.c.l.b16 %v1254
  %v1291 = vunpack.c.l.b16 %v1255
  %v1292 = vunpack.c.l.b16 %v1256
  %v1293 = vunpack.c.l.b16 %v1257
  %v1294 = vunpack.c.l.b16 %v1258
  %v1295 = vpack.c.b16 %v1280, %v1279
  %v1296 = vpack.c.b16 %v1282, %v1281
  %v1297 = vpack.c.b16 %v1284, %v1283
  %v1298 = vpack.c.b16 %v1286, %v1285
  %v1299 = vpack.c.b16 %v1288, %v1287
  %v1300 = vpack.c.b16 %v1290, %v1289
  %v1301 = vpack.c.b16 %v1292, %v1291
  %v1302 = vpack.c.b16 %v1294, %v1293
  %1311 = vmatpush.bf16.msra.mxu0 %v1302
  %1312 = vmatpush.bf16.msra.mxu0 %v1301
  %1313 = vmatpush.bf16.msra.mxu0 %v1300
  %1314 = vmatpush.bf16.msra.mxu0 %v1299
  %1315 = vmatpush.bf16.msra.mxu0 %v1298
  %1316 = vmatpush.bf16.msra.mxu0 %v1297
  %1317 = vmatpush.bf16.msra.mxu0 %v1296
  %1318 = vmatpush.bf16.msra.mxu0 %v1295
  %1319 = vmatmul.bf16.gmra.mxu0 %v1241
  %v1320 = vpop.f32.mrf.mxu0
  %v1321 = vadd.f32 %v1261, %v1320
  %v1322 = vpop.f32.mrf.mxu0
  %v1323 = vadd.f32 %v1261, %v1322
  %1324 = vmatmul.bf16.gmra.mxu0 %v1242
  %v1325 = vpop.f32.mrf.mxu0
  %v1326 = vadd.f32 %v1261, %v1325
  %v1327 = vpop.f32.mrf.mxu0
  %v1328 = vadd.f32 %v1261, %v1327
  %1329 = vdwg.mxu0
  %1330 = vst [vmem:[%s12] sm:$0xff] %v1321
  %1331 = vst [vmem:[%s12 + $0x8] sm:$0xff] %v1323
  %1332 = vst [vmem:[%s12 + $0x10] sm:$0xff] %v1326
  %1333 = vst [vmem:[%s12 + $0x18] sm:$0xff] %v1328
  // Predicated region
  $region50: #{tdnn_forward.1} parent=0 // pred_check
    _
  $region51: #{tdnn_forward.1} parent=0 // pred_check_branch
    %1335 = sbr.rel (0) target = $region53
  $region52: #{tdnn_forward.1} parent=0 // pred_region
    _
  $region53: #{tdnn_forward.1} parent=0 // pred_fallthru
    _
  // Predicated region
  $region54: #{tdnn_forward.1} parent=0 // pred_check
    _
  $region55: #{tdnn_forward.1} parent=0 // pred_check_branch
    %1337 = sbr.rel (0) target = $region57
  $region56: #{tdnn_forward.1} parent=0 // pred_region
    _
  $region57: #{tdnn_forward.1} parent=0 // pred_fallthru
    _

</llo_original>
